<compile_context>
chip_gen: v7x
topology: tpu7x:2x2x1
jax: 0.10.0
libtpu: 0.0.40
codegen_flags: <defaults>
</compile_context>

<pallas_src>
import functools

import jax
import jax.numpy as jnp
from jax import lax
from jax.experimental import pallas as pl
from jax.experimental.pallas import tpu as pltpu


# ----------------------------------------------------------------------------
# Fused Pallas kernel: stacked ReLU-RNN layers + final Linear in one launch
# ----------------------------------------------------------------------------
def _make_fused_kernel(T, B, num_layers):
    """Build the fused forward kernel for static (T, B, num_layers)."""

    def kernel(*refs):
        # refs = (x_ref, [w_ih, w_hh, b] * num_layers, w_lin, b_lin, o_ref)
        x_ref = refs[0]
        layer_refs = refs[1:1 + 3 * num_layers]
        w_lin_ref = refs[1 + 3 * num_layers]
        b_lin_ref = refs[2 + 3 * num_layers]
        o_ref = refs[-1]

        cur = x_ref[...].astype(jnp.float32)           # (T*B, D_in), time-major

        for layer in range(num_layers):
            w_ih = layer_refs[3 * layer][...]          # (D_in, H)
            w_hh = layer_refs[3 * layer + 1][...]      # (H, H)
            b = layer_refs[3 * layer + 2][...]         # (1, H) combined bias
            H = w_ih.shape[1]
            last = layer == num_layers - 1

            # Hoisted input projection: ONE batched matmul for all T timesteps
            # (instead of T tiny matmuls on the serial critical path).
            pre = jnp.dot(cur, w_ih, preferred_element_type=jnp.float32) + b  # (T*B, H)

            # Serial recurrence, fully unrolled (T is small & static);
            # h stays in vregs — no per-step VMEM store/load of the carry.
            h = jnp.zeros((B, H), jnp.float32)
            outs = []
            for t in range(T):
                pre_t = pre[t * B:(t + 1) * B]         # (B, H), static slice
                h = jnp.maximum(
                    pre_t
                    + jnp.dot(h, w_hh, preferred_element_type=jnp.float32),
                    0.0,
                )
                if not last:
                    outs.append(h)

            if last:
                cur = h                                # only the final hidden state is needed
            else:
                cur = jnp.concatenate(outs, axis=0)    # (T*B, H), time-major

        # Fused final linear layer on the last hidden state.
        o_ref[...] = (
            jnp.dot(cur, w_lin_ref[...], preferred_element_type=jnp.float32)
            + b_lin_ref[...]
        ).astype(o_ref.dtype)

    return kernel


# ----------------------------------------------------------------------------
# Wrapper (single pallas_call for the whole forward pass)
# ----------------------------------------------------------------------------
def fused_forward(x, params):
    """x: (B, T, n_inputs) batch-first (PyTorch convention) -> (B, n_outputs)."""
    B, T, D = x.shape
    # Tiny XLA transpose+reshape of the input only (negligible at these shapes).
    # TODO(synk): at large T*B*D fold this into the kernel's load indexing
    # (or a gridded BlockSpec over T) instead of a wrapper-side transpose.
    x_tm = jnp.transpose(x, (1, 0, 2)).reshape(T * B, D)

    num_layers = len(params["rnn"])
    w_lin, b_lin = params["linear"]
    n_out = w_lin.shape[1]

    inputs = [x_tm]
    for w_ih, w_hh, b in params["rnn"]:
        inputs += [w_ih, w_hh, b]
    inputs += [w_lin, b_lin]

    vmem = pl.BlockSpec(memory_space=pltpu.MemorySpace.VMEM)
    return pl.pallas_call(
        _make_fused_kernel(T, B, num_layers),
        out_shape=jax.ShapeDtypeStruct((B, n_out), x.dtype),
        in_specs=[vmem] * len(inputs),
        out_specs=vmem,
    )(*inputs)


forward = jax.jit(fused_forward)


# ----------------------------------------------------------------------------
# Parameter construction (deterministic, mirrors PyTorch shapes/init ranges)
# ----------------------------------------------------------------------------
def init_params(key, n_inputs, hidden_sizes, n_outputs, dtype=jnp.float32):
    n_neurons = [n_inputs, *hidden_sizes, n_outputs]
    params = {"rnn": [], "linear": None}
    for i in range(len(n_neurons) - 2):
        d_in, h = n_neurons[i], n_neurons[i + 1]
        k = 1.0 / jnp.sqrt(jnp.array(h, dtype=dtype))
        key, k1, k2, k3, k4 = jax.random.split(key, 5)
        # PyTorch stores weight_ih as (H, D_in); we keep it transposed (D_in, H).
        w_ih = jax.random.uniform(k1, (d_in, h), dtype, -k, k)
        w_hh = jax.random.uniform(k2, (h, h), dtype, -k, k)
        b_ih = jax.random.uniform(k3, (h,), dtype, -k, k)
        b_hh = jax.random.uniform(k4, (h,), dtype, -k, k)
        params["rnn"].append((w_ih, w_hh, (b_ih + b_hh).reshape(1, h)))
    d_in, n_out = n_neurons[-2], n_neurons[-1]
    k = 1.0 / jnp.sqrt(jnp.array(d_in, dtype=dtype))
    key, k1, k2 = jax.random.split(key, 3)
    w = jax.random.uniform(k1, (d_in, n_out), dtype, -k, k)
    b = jax.random.uniform(k2, (n_out,), dtype, -k, k).reshape(1, n_out)
    params["linear"] = (w, b)
    return params


# ----------------------------------------------------------------------------
# Pure-JAX reference (matches RecurrentNetwork.forward semantics)
# ----------------------------------------------------------------------------
def forward_reference(x, params):
    x_tm = jnp.transpose(x, (1, 0, 2))
    for w_ih, w_hh, b in params["rnn"]:
        T, B, _ = x_tm.shape
        H = w_ih.shape[1]
        h = jnp.zeros((B, H), x.dtype)
        outs = []
        for t in range(T):
            h = jnp.maximum(x_tm[t] @ w_ih + h @ w_hh + b, 0.0)
            outs.append(h)
        x_tm = jnp.stack(outs, axis=0)
    w, b = params["linear"]
    return x_tm[-1] @ w + b


if __name__ == "__main__":
    # Small shapes: param_dict = {'n_inputs': 4, 'params': [32, 32], 'n_outputs': 2}
    B, T = 2, 8
    n_inputs, hidden_sizes, n_outputs = 4, [32, 32], 2

    key = jax.random.PRNGKey(0)
    key_x, key_p = jax.random.split(key)
    x = jax.random.normal(key_x, (B, T, n_inputs), dtype=jnp.float32)
    params = init_params(key_p, n_inputs, hidden_sizes, n_outputs)

    out = forward(x, params)
    out = jax.block_until_ready(out)

    ref = forward_reference(x, params)
    assert out.shape == (B, n_outputs), out.shape
    assert jnp.allclose(out, ref, atol=1e-5, rtol=1e-5), (out, ref)

    print("KERNEL_OK")
</pallas_src>

<mosaic_0001>
module attributes {stable_mosaic.version = 11 : i64} {
  func.func @kernel(%arg0: memref<16x4xf32, #tpu.memory_space<vmem>>, %arg1: memref<4x32xf32, #tpu.memory_space<vmem>>, %arg2: memref<32x32xf32, #tpu.memory_space<vmem>>, %arg3: memref<1x32xf32, #tpu.memory_space<vmem>>, %arg4: memref<32x32xf32, #tpu.memory_space<vmem>>, %arg5: memref<32x32xf32, #tpu.memory_space<vmem>>, %arg6: memref<1x32xf32, #tpu.memory_space<vmem>>, %arg7: memref<32x2xf32, #tpu.memory_space<vmem>>, %arg8: memref<1x2xf32, #tpu.memory_space<vmem>>, %arg9: memref<2x2xf32, #tpu.memory_space<vmem>>) attributes {dimension_semantics = [], scalar_prefetch = 0 : i64, scratch_operands = 0 : i64, tpu.core_type = #tpu.core_type<tc>} {
    %c0 = arith.constant 0 : index
    %c0_0 = arith.constant 0 : index
    %0 = vector.load %arg0[%c0, %c0_0] : memref<16x4xf32, #tpu.memory_space<vmem>>, vector<16x4xf32>
    %c0_1 = arith.constant 0 : index
    %c0_2 = arith.constant 0 : index
    %1 = vector.load %arg1[%c0_1, %c0_2] : memref<4x32xf32, #tpu.memory_space<vmem>>, vector<4x32xf32>
    %c0_3 = arith.constant 0 : index
    %c0_4 = arith.constant 0 : index
    %2 = vector.load %arg2[%c0_3, %c0_4] : memref<32x32xf32, #tpu.memory_space<vmem>>, vector<32x32xf32>
    %c0_5 = arith.constant 0 : index
    %c0_6 = arith.constant 0 : index
    %3 = vector.load %arg3[%c0_5, %c0_6] : memref<1x32xf32, #tpu.memory_space<vmem>>, vector<1x32xf32>
    %cst = arith.constant dense<0.000000e+00> : vector<16x32xf32>
    %4 = tpu.matmul %0, %1, %cst {dimension_numbers = #tpu.dot_dimension_numbers<[1], [0], [0], [1], [0, 0, 1, 1], [], []>} : vector<16x4xf32>, vector<4x32xf32>, vector<16x32xf32> -> vector<16x32xf32>
    %5 = vector.broadcast %3 : vector<1x32xf32> to vector<16x32xf32>
    %6 = arith.addf %4, %5 : vector<16x32xf32>
    %cst_7 = arith.constant 0.000000e+00 : f32
    %7 = vector.broadcast %cst_7 : f32 to vector<2x32xf32>
    %8 = vector.extract_strided_slice %6 {offsets = [0, 0], sizes = [2, 32], strides = [1, 1]} : vector<16x32xf32> to vector<2x32xf32>
    %cst_8 = arith.constant dense<0.000000e+00> : vector<2x32xf32>
    %9 = tpu.matmul %7, %2, %cst_8 {dimension_numbers = #tpu.dot_dimension_numbers<[1], [0], [0], [1], [0, 0, 1, 1], [], []>} : vector<2x32xf32>, vector<32x32xf32>, vector<2x32xf32> -> vector<2x32xf32>
    %10 = arith.addf %8, %9 : vector<2x32xf32>
    %cst_9 = arith.constant 0.000000e+00 : f32
    %11 = vector.broadcast %cst_9 : f32 to vector<2x32xf32>
    %12 = arith.maximumf %10, %11 : vector<2x32xf32>
    %13 = vector.extract_strided_slice %6 {offsets = [2, 0], sizes = [2, 32], strides = [1, 1]} : vector<16x32xf32> to vector<2x32xf32>
    %cst_10 = arith.constant dense<0.000000e+00> : vector<2x32xf32>
    %14 = tpu.matmul %12, %2, %cst_10 {dimension_numbers = #tpu.dot_dimension_numbers<[1], [0], [0], [1], [0, 0, 1, 1], [], []>} : vector<2x32xf32>, vector<32x32xf32>, vector<2x32xf32> -> vector<2x32xf32>
    %15 = arith.addf %13, %14 : vector<2x32xf32>
    %cst_11 = arith.constant 0.000000e+00 : f32
    %16 = vector.broadcast %cst_11 : f32 to vector<2x32xf32>
    %17 = arith.maximumf %15, %16 : vector<2x32xf32>
    %18 = vector.extract_strided_slice %6 {offsets = [4, 0], sizes = [2, 32], strides = [1, 1]} : vector<16x32xf32> to vector<2x32xf32>
    %cst_12 = arith.constant dense<0.000000e+00> : vector<2x32xf32>
    %19 = tpu.matmul %17, %2, %cst_12 {dimension_numbers = #tpu.dot_dimension_numbers<[1], [0], [0], [1], [0, 0, 1, 1], [], []>} : vector<2x32xf32>, vector<32x32xf32>, vector<2x32xf32> -> vector<2x32xf32>
    %20 = arith.addf %18, %19 : vector<2x32xf32>
    %cst_13 = arith.constant 0.000000e+00 : f32
    %21 = vector.broadcast %cst_13 : f32 to vector<2x32xf32>
    %22 = arith.maximumf %20, %21 : vector<2x32xf32>
    %23 = vector.extract_strided_slice %6 {offsets = [6, 0], sizes = [2, 32], strides = [1, 1]} : vector<16x32xf32> to vector<2x32xf32>
    %cst_14 = arith.constant dense<0.000000e+00> : vector<2x32xf32>
    %24 = tpu.matmul %22, %2, %cst_14 {dimension_numbers = #tpu.dot_dimension_numbers<[1], [0], [0], [1], [0, 0, 1, 1], [], []>} : vector<2x32xf32>, vector<32x32xf32>, vector<2x32xf32> -> vector<2x32xf32>
    %25 = arith.addf %23, %24 : vector<2x32xf32>
    %cst_15 = arith.constant 0.000000e+00 : f32
    %26 = vector.broadcast %cst_15 : f32 to vector<2x32xf32>
    %27 = arith.maximumf %25, %26 : vector<2x32xf32>
    %28 = vector.extract_strided_slice %6 {offsets = [8, 0], sizes = [2, 32], strides = [1, 1]} : vector<16x32xf32> to vector<2x32xf32>
    %cst_16 = arith.constant dense<0.000000e+00> : vector<2x32xf32>
    %29 = tpu.matmul %27, %2, %cst_16 {dimension_numbers = #tpu.dot_dimension_numbers<[1], [0], [0], [1], [0, 0, 1, 1], [], []>} : vector<2x32xf32>, vector<32x32xf32>, vector<2x32xf32> -> vector<2x32xf32>
    %30 = arith.addf %28, %29 : vector<2x32xf32>
    %cst_17 = arith.constant 0.000000e+00 : f32
    %31 = vector.broadcast %cst_17 : f32 to vector<2x32xf32>
    %32 = arith.maximumf %30, %31 : vector<2x32xf32>
    %33 = vector.extract_strided_slice %6 {offsets = [10, 0], sizes = [2, 32], strides = [1, 1]} : vector<16x32xf32> to vector<2x32xf32>
    %cst_18 = arith.constant dense<0.000000e+00> : vector<2x32xf32>
    %34 = tpu.matmul %32, %2, %cst_18 {dimension_numbers = #tpu.dot_dimension_numbers<[1], [0], [0], [1], [0, 0, 1, 1], [], []>} : vector<2x32xf32>, vector<32x32xf32>, vector<2x32xf32> -> vector<2x32xf32>
    %35 = arith.addf %33, %34 : vector<2x32xf32>
    %cst_19 = arith.constant 0.000000e+00 : f32
    %36 = vector.broadcast %cst_19 : f32 to vector<2x32xf32>
    %37 = arith.maximumf %35, %36 : vector<2x32xf32>
    %38 = vector.extract_strided_slice %6 {offsets = [12, 0], sizes = [2, 32], strides = [1, 1]} : vector<16x32xf32> to vector<2x32xf32>
    %cst_20 = arith.constant dense<0.000000e+00> : vector<2x32xf32>
    %39 = tpu.matmul %37, %2, %cst_20 {dimension_numbers = #tpu.dot_dimension_numbers<[1], [0], [0], [1], [0, 0, 1, 1], [], []>} : vector<2x32xf32>, vector<32x32xf32>, vector<2x32xf32> -> vector<2x32xf32>
    %40 = arith.addf %38, %39 : vector<2x32xf32>
    %cst_21 = arith.constant 0.000000e+00 : f32
    %41 = vector.broadcast %cst_21 : f32 to vector<2x32xf32>
    %42 = arith.maximumf %40, %41 : vector<2x32xf32>
    %43 = vector.extract_strided_slice %6 {offsets = [14, 0], sizes = [2, 32], strides = [1, 1]} : vector<16x32xf32> to vector<2x32xf32>
    %cst_22 = arith.constant dense<0.000000e+00> : vector<2x32xf32>
    %44 = tpu.matmul %42, %2, %cst_22 {dimension_numbers = #tpu.dot_dimension_numbers<[1], [0], [0], [1], [0, 0, 1, 1], [], []>} : vector<2x32xf32>, vector<32x32xf32>, vector<2x32xf32> -> vector<2x32xf32>
    %45 = arith.addf %43, %44 : vector<2x32xf32>
    %cst_23 = arith.constant 0.000000e+00 : f32
    %46 = vector.broadcast %cst_23 : f32 to vector<2x32xf32>
    %47 = arith.maximumf %45, %46 : vector<2x32xf32>
    %48 = tpu.concatenate %12, %17, %22, %27, %32, %37, %42, %47 in 0 : vector<2x32xf32>, vector<2x32xf32>, vector<2x32xf32>, vector<2x32xf32>, vector<2x32xf32>, vector<2x32xf32>, vector<2x32xf32>, vector<2x32xf32> -> vector<16x32xf32>
    %c0_24 = arith.constant 0 : index
    %c0_25 = arith.constant 0 : index
    %49 = vector.load %arg4[%c0_24, %c0_25] : memref<32x32xf32, #tpu.memory_space<vmem>>, vector<32x32xf32>
    %c0_26 = arith.constant 0 : index
    %c0_27 = arith.constant 0 : index
    %50 = vector.load %arg5[%c0_26, %c0_27] : memref<32x32xf32, #tpu.memory_space<vmem>>, vector<32x32xf32>
    %c0_28 = arith.constant 0 : index
    %c0_29 = arith.constant 0 : index
    %51 = vector.load %arg6[%c0_28, %c0_29] : memref<1x32xf32, #tpu.memory_space<vmem>>, vector<1x32xf32>
    %cst_30 = arith.constant dense<0.000000e+00> : vector<16x32xf32>
    %52 = tpu.matmul %48, %49, %cst_30 {dimension_numbers = #tpu.dot_dimension_numbers<[1], [0], [0], [1], [0, 0, 1, 1], [], []>} : vector<16x32xf32>, vector<32x32xf32>, vector<16x32xf32> -> vector<16x32xf32>
    %53 = vector.broadcast %51 : vector<1x32xf32> to vector<16x32xf32>
    %54 = arith.addf %52, %53 : vector<16x32xf32>
    %cst_31 = arith.constant 0.000000e+00 : f32
    %55 = vector.broadcast %cst_31 : f32 to vector<2x32xf32>
    %56 = vector.extract_strided_slice %54 {offsets = [0, 0], sizes = [2, 32], strides = [1, 1]} : vector<16x32xf32> to vector<2x32xf32>
    %cst_32 = arith.constant dense<0.000000e+00> : vector<2x32xf32>
    %57 = tpu.matmul %55, %50, %cst_32 {dimension_numbers = #tpu.dot_dimension_numbers<[1], [0], [0], [1], [0, 0, 1, 1], [], []>} : vector<2x32xf32>, vector<32x32xf32>, vector<2x32xf32> -> vector<2x32xf32>
    %58 = arith.addf %56, %57 : vector<2x32xf32>
    %cst_33 = arith.constant 0.000000e+00 : f32
    %59 = vector.broadcast %cst_33 : f32 to vector<2x32xf32>
    %60 = arith.maximumf %58, %59 : vector<2x32xf32>
    %61 = vector.extract_strided_slice %54 {offsets = [2, 0], sizes = [2, 32], strides = [1, 1]} : vector<16x32xf32> to vector<2x32xf32>
    %cst_34 = arith.constant dense<0.000000e+00> : vector<2x32xf32>
    %62 = tpu.matmul %60, %50, %cst_34 {dimension_numbers = #tpu.dot_dimension_numbers<[1], [0], [0], [1], [0, 0, 1, 1], [], []>} : vector<2x32xf32>, vector<32x32xf32>, vector<2x32xf32> -> vector<2x32xf32>
    %63 = arith.addf %61, %62 : vector<2x32xf32>
    %cst_35 = arith.constant 0.000000e+00 : f32
    %64 = vector.broadcast %cst_35 : f32 to vector<2x32xf32>
    %65 = arith.maximumf %63, %64 : vector<2x32xf32>
    %66 = vector.extract_strided_slice %54 {offsets = [4, 0], sizes = [2, 32], strides = [1, 1]} : vector<16x32xf32> to vector<2x32xf32>
    %cst_36 = arith.constant dense<0.000000e+00> : vector<2x32xf32>
    %67 = tpu.matmul %65, %50, %cst_36 {dimension_numbers = #tpu.dot_dimension_numbers<[1], [0], [0], [1], [0, 0, 1, 1], [], []>} : vector<2x32xf32>, vector<32x32xf32>, vector<2x32xf32> -> vector<2x32xf32>
    %68 = arith.addf %66, %67 : vector<2x32xf32>
    %cst_37 = arith.constant 0.000000e+00 : f32
    %69 = vector.broadcast %cst_37 : f32 to vector<2x32xf32>
    %70 = arith.maximumf %68, %69 : vector<2x32xf32>
    %71 = vector.extract_strided_slice %54 {offsets = [6, 0], sizes = [2, 32], strides = [1, 1]} : vector<16x32xf32> to vector<2x32xf32>
    %cst_38 = arith.constant dense<0.000000e+00> : vector<2x32xf32>
    %72 = tpu.matmul %70, %50, %cst_38 {dimension_numbers = #tpu.dot_dimension_numbers<[1], [0], [0], [1], [0, 0, 1, 1], [], []>} : vector<2x32xf32>, vector<32x32xf32>, vector<2x32xf32> -> vector<2x32xf32>
    %73 = arith.addf %71, %72 : vector<2x32xf32>
    %cst_39 = arith.constant 0.000000e+00 : f32
    %74 = vector.broadcast %cst_39 : f32 to vector<2x32xf32>
    %75 = arith.maximumf %73, %74 : vector<2x32xf32>
    %76 = vector.extract_strided_slice %54 {offsets = [8, 0], sizes = [2, 32], strides = [1, 1]} : vector<16x32xf32> to vector<2x32xf32>
    %cst_40 = arith.constant dense<0.000000e+00> : vector<2x32xf32>
    %77 = tpu.matmul %75, %50, %cst_40 {dimension_numbers = #tpu.dot_dimension_numbers<[1], [0], [0], [1], [0, 0, 1, 1], [], []>} : vector<2x32xf32>, vector<32x32xf32>, vector<2x32xf32> -> vector<2x32xf32>
    %78 = arith.addf %76, %77 : vector<2x32xf32>
    %cst_41 = arith.constant 0.000000e+00 : f32
    %79 = vector.broadcast %cst_41 : f32 to vector<2x32xf32>
    %80 = arith.maximumf %78, %79 : vector<2x32xf32>
    %81 = vector.extract_strided_slice %54 {offsets = [10, 0], sizes = [2, 32], strides = [1, 1]} : vector<16x32xf32> to vector<2x32xf32>
    %cst_42 = arith.constant dense<0.000000e+00> : vector<2x32xf32>
    %82 = tpu.matmul %80, %50, %cst_42 {dimension_numbers = #tpu.dot_dimension_numbers<[1], [0], [0], [1], [0, 0, 1, 1], [], []>} : vector<2x32xf32>, vector<32x32xf32>, vector<2x32xf32> -> vector<2x32xf32>
    %83 = arith.addf %81, %82 : vector<2x32xf32>
    %cst_43 = arith.constant 0.000000e+00 : f32
    %84 = vector.broadcast %cst_43 : f32 to vector<2x32xf32>
    %85 = arith.maximumf %83, %84 : vector<2x32xf32>
    %86 = vector.extract_strided_slice %54 {offsets = [12, 0], sizes = [2, 32], strides = [1, 1]} : vector<16x32xf32> to vector<2x32xf32>
    %cst_44 = arith.constant dense<0.000000e+00> : vector<2x32xf32>
    %87 = tpu.matmul %85, %50, %cst_44 {dimension_numbers = #tpu.dot_dimension_numbers<[1], [0], [0], [1], [0, 0, 1, 1], [], []>} : vector<2x32xf32>, vector<32x32xf32>, vector<2x32xf32> -> vector<2x32xf32>
    %88 = arith.addf %86, %87 : vector<2x32xf32>
    %cst_45 = arith.constant 0.000000e+00 : f32
    %89 = vector.broadcast %cst_45 : f32 to vector<2x32xf32>
    %90 = arith.maximumf %88, %89 : vector<2x32xf32>
    %91 = vector.extract_strided_slice %54 {offsets = [14, 0], sizes = [2, 32], strides = [1, 1]} : vector<16x32xf32> to vector<2x32xf32>
    %cst_46 = arith.constant dense<0.000000e+00> : vector<2x32xf32>
    %92 = tpu.matmul %90, %50, %cst_46 {dimension_numbers = #tpu.dot_dimension_numbers<[1], [0], [0], [1], [0, 0, 1, 1], [], []>} : vector<2x32xf32>, vector<32x32xf32>, vector<2x32xf32> -> vector<2x32xf32>
    %93 = arith.addf %91, %92 : vector<2x32xf32>
    %cst_47 = arith.constant 0.000000e+00 : f32
    %94 = vector.broadcast %cst_47 : f32 to vector<2x32xf32>
    %95 = arith.maximumf %93, %94 : vector<2x32xf32>
    %c0_48 = arith.constant 0 : index
    %c0_49 = arith.constant 0 : index
    %96 = vector.load %arg7[%c0_48, %c0_49] : memref<32x2xf32, #tpu.memory_space<vmem>>, vector<32x2xf32>
    %cst_50 = arith.constant dense<0.000000e+00> : vector<2x2xf32>
    %97 = tpu.matmul %95, %96, %cst_50 {dimension_numbers = #tpu.dot_dimension_numbers<[1], [0], [0], [1], [0, 0, 1, 1], [], []>} : vector<2x32xf32>, vector<32x2xf32>, vector<2x2xf32> -> vector<2x2xf32>
    %c0_51 = arith.constant 0 : index
    %c0_52 = arith.constant 0 : index
    %98 = vector.load %arg8[%c0_51, %c0_52] : memref<1x2xf32, #tpu.memory_space<vmem>>, vector<1x2xf32>
    %99 = vector.broadcast %98 : vector<1x2xf32> to vector<2x2xf32>
    %100 = arith.addf %97, %99 : vector<2x2xf32>
    %c0_53 = arith.constant 0 : index
    %c0_54 = arith.constant 0 : index
    %101 = vector.load %arg9[%c0_53, %c0_54] : memref<2x2xf32, #tpu.memory_space<vmem>>, vector<2x2xf32>
    tpu.vector_store %arg9[%c0_53, %c0_54], %100 {strides = array<i32>} : memref<2x2xf32, #tpu.memory_space<vmem>>, vector<2x2xf32>,
    return
  }
}

</mosaic_0001>

<llo_original>
// kernel: fused_forward.1
$region0: #{fused_forward.1}
  #allocation0 [shape = 'u32[]', space=smem, size = 0x4, offset = 0x4, fixed_abs, tag = 'smem constant byte address 0x4 - core index']
  #allocation1 [shape = 'u32[144,128]{1,0:T(1,128)}', space=vmem, size = 0x12000, scoped, tag = 'internal scratch']
  %s0 = inlined_call_operand.vmem [shape: f32[16,4], index: 0, kind: input, shape index: {}]
  %s1 = inlined_call_operand.vmem [shape: f32[4,32], index: 1, kind: input, shape index: {}]
  %s2 = inlined_call_operand.vmem [shape: f32[32,32], index: 2, kind: input, shape index: {}]
  %s3 = inlined_call_operand.vmem [shape: f32[1,32], index: 3, kind: input, shape index: {}]
  %s4 = inlined_call_operand.vmem [shape: f32[32,32], index: 4, kind: input, shape index: {}]
  %s5 = inlined_call_operand.hbm [shape: f32[32,32], index: 5, kind: input, shape index: {}]
  %s6 = inlined_call_operand.vmem [shape: f32[1,32], index: 6, kind: input, shape index: {}]
  %s7 = inlined_call_operand.vmem [shape: f32[32,2], index: 7, kind: input, shape index: {}]
  %s8 = inlined_call_operand.vmem [shape: f32[1,2], index: 8, kind: input, shape index: {}]
  %s9 = inlined_call_operand.hbm [shape: f32[2,2], index: 9, kind: output, shape index: {}]
  %s10 = sld [smem:[#allocation0]]
  $region50: #{fused_forward.1} parent=0
    _
  %s12 = ssub.s32 1, %s10
  %s13 = scalar_select 0, %s12, %s10
  $region1: #{fused_forward.1} parent=0
    #allocation2 [shape = 'u8[16384]{0}', space=vmem, size = 0x4000, scoped, tag = 'input window, operand 5, single buffered']
    #allocation3 [shape = 's32[1]{0}', space=sflag, size = 0x4, scoped, tag = 'scoped memory for fused_forward.1']
    #allocation4 [shape = 's32[1]{0}', space=sflag, size = 0x4, scoped, tag = 'scoped memory for fused_forward.1']
    #allocation5 [shape = 'u8[1024]{0}', space=vmem, size = 0x400, scoped, tag = 'output window, operand 0, single buffered']
    %14 = vsyncpa [#allocation3], 0
    %15 = vsyncpa [#allocation4], 0
    // Predicated region
    $region2: #{fused_forward.1} parent=1 // pred_check
      _
    $region3: #{fused_forward.1} parent=1 // pred_check_branch
      %17 = sbr.rel (0) target = $region5
    $region4: #{fused_forward.1} parent=1 // pred_region
      _
    $region5: #{fused_forward.1} parent=1 // pred_fallthru
      _
    // Predicated region
    $region6: #{fused_forward.1} parent=1 // pred_check
      _
    $region7: #{fused_forward.1} parent=1 // pred_check_branch
      %19 = sbr.rel (0) target = $region9
    $region8: #{fused_forward.1} parent=1 // pred_region
      _
    $region9: #{fused_forward.1} parent=1 // pred_fallthru
      _
    // Predicated region
    $region10: #{fused_forward.1} parent=1 // pred_check
      _
    $region11: #{fused_forward.1} parent=1 // pred_check_branch
      %21 = sbr.rel (0) target = $region13
    $region12: #{fused_forward.1} parent=1 // pred_region
      _
    $region13: #{fused_forward.1} parent=1 // pred_fallthru
      _
    // Predicated region
    $region14: #{fused_forward.1} parent=1 // pred_check
      _
    $region15: #{fused_forward.1} parent=1 // pred_check_branch
      %23 = sbr.rel (0) target = $region17
    $region16: #{fused_forward.1} parent=1 // pred_region
      _
    $region17: #{fused_forward.1} parent=1 // pred_fallthru
      _
    // Predicated region
    $region18: #{fused_forward.1} parent=1 // pred_check
      _
    $region19: #{fused_forward.1} parent=1 // pred_check_branch
      %25 = sbr.rel (0) target = $region21
    $region20: #{fused_forward.1} parent=1 // pred_region
      _
    $region21: #{fused_forward.1} parent=1 // pred_fallthru
      _
    // Predicated region
    $region22: #{fused_forward.1} parent=1 // pred_check
      _
    $region23: #{fused_forward.1} parent=1 // pred_check_branch
      %27 = sbr.rel (0) target = $region25
    $region24: #{fused_forward.1} parent=1 // pred_region
      %s29 = ssub.s32 512, 512
      %30 = vsyncadd [#allocation3], %s29
      %s31 = sshll.u32 [#allocation2], 4
      %s32 = int_to_ptr.vmem [resolvable:$true] %s31
      %37 = dma.hbm_to_vmem [thread:$0]  %s5, 512, %s32, [#allocation3], 128, 128, 8
    $region25: #{fused_forward.1} parent=1 // pred_fallthru
      _
    // Predicated region
    $region26: #{fused_forward.1} parent=1 // pred_check
      _
    $region27: #{fused_forward.1} parent=1 // pred_check_branch
      %39 = sbr.rel (0) target = $region29
    $region28: #{fused_forward.1} parent=1 // pred_region
      _
    $region29: #{fused_forward.1} parent=1 // pred_fallthru
      _
    // Predicated region
    $region30: #{fused_forward.1} parent=1 // pred_check
      _
    $region31: #{fused_forward.1} parent=1 // pred_check_branch
      %41 = sbr.rel (0) target = $region33
    $region32: #{fused_forward.1} parent=1 // pred_region
      _
    $region33: #{fused_forward.1} parent=1 // pred_fallthru
      _
    // Predicated region
    $region34: #{fused_forward.1} parent=1 // pred_check
      _
    $region35: #{fused_forward.1} parent=1 // pred_check_branch
      %43 = sbr.rel (0) target = $region37
    $region36: #{fused_forward.1} parent=1 // pred_region
      _
    $region37: #{fused_forward.1} parent=1 // pred_fallthru
      _
    // Predicated region
    $region38: #{fused_forward.1} parent=1 // pred_check
      _
    $region39: #{fused_forward.1} parent=1 // pred_check_branch
      %45 = sbr.rel (0) target = $region41
    $region40: #{fused_forward.1} parent=1 // pred_region
      %46 = dma.done [#allocation3], 512
    $region41: #{fused_forward.1} parent=1 // pred_fallthru
      _
    %v47 = vld [vmem:[%s0] sm:$0xff]
    %v48 = vld [vmem:[%s0 + $0x8] sm:$0xff]
    %v49 = vld [vmem:[%s1] sm:$0xf]
    %v50 = vld [vmem:[%s2] sm:$0xff]
    %v51 = vld [vmem:[%s2 + $0x8] sm:$0xff]
    %v52 = vld [vmem:[%s2 + $0x10] sm:$0xff]
    %v53 = vld [vmem:[%s2 + $0x18] sm:$0xff]
    %v54 = vld [vmem:[%s3] sm:$0x1]
    %v56 = vlaneseq
    %v57 = vshrl.u32 %v56, 7
    %v58 = vsub.s32 0, %v57
    %v59 = vrot.slane %v54, %v58
    %vm61 = vcmask 31744
    %v63 = vsel %vm61, %v47, 0
    %v66 = vsel %vm61, %v48, 0
    %vm68 = vcmask 1043456
    %v70 = vsel %vm68, %v49, 0
    %72 = vmatprep.subr.mxu0 0.0
    %73 = vmatpush1.msra.mxu0 %v70
    %74 = vmatprep.subr.mxu0 0.0
    %75 = vmatpush1.msra.mxu0 0.0
    %76 = vmatprep.subr.mxu0 0.0
    %77 = vmatpush1.msra.mxu0 0.0
    %78 = vmatprep.subr.mxu0 0.0
    %79 = vmatpush1.msra.mxu0 0.0
    %80 = vmatprep.subr.mxu0 0.0
    %81 = vmatpush1.msra.mxu0 0.0
    %82 = vmatprep.subr.mxu0 0.0
    %83 = vmatpush1.msra.mxu0 0.0
    %84 = vmatprep.subr.mxu0 0.0
    %85 = vmatpush1.msra.mxu0 0.0
    %86 = vmatprep.subr.mxu0 0.0
    %87 = vmatpush1.msra.mxu0 0.0
    %88 = vmatprep.subr.mxu0 0.0
    %89 = vmatpush1.msra.mxu0 0.0
    %90 = vmatprep.subr.mxu0 0.0
    %91 = vmatpush1.msra.mxu0 0.0
    %92 = vmatprep.subr.mxu0 0.0
    %93 = vmatpush1.msra.mxu0 0.0
    %94 = vmatprep.subr.mxu0 0.0
    %95 = vmatpush1.msra.mxu0 0.0
    %96 = vmatprep.subr.mxu0 0.0
    %97 = vmatpush1.msra.mxu0 0.0
    %98 = vmatprep.subr.mxu0 0.0
    %99 = vmatpush1.msra.mxu0 0.0
    %100 = vmatprep.subr.mxu0 0.0
    %101 = vmatpush1.msra.mxu0 0.0
    %102 = vmatprep.subr.mxu0 0.0
    %103 = vmatpush1.msra.mxu0 0.0
    %104 = vmatprep.subr.mxu0 0.0
    %105 = vmatpush1.msra.mxu0 0.0
    %106 = vmatprep.subr.mxu0 0.0
    %107 = vmatpush1.msra.mxu0 0.0
    %108 = vmatprep.subr.mxu0 0.0
    %109 = vmatpush1.msra.mxu0 0.0
    %110 = vmatprep.subr.mxu0 0.0
    %111 = vmatpush1.msra.mxu0 0.0
    %112 = vmatprep.subr.mxu0 0.0
    %113 = vmatpush1.msra.mxu0 0.0
    %114 = vmatprep.subr.mxu0 0.0
    %115 = vmatpush1.msra.mxu0 0.0
    %116 = vmatprep.subr.mxu0 0.0
    %117 = vmatpush1.msra.mxu0 0.0
    %118 = vmatprep.subr.mxu0 0.0
    %119 = vmatpush1.msra.mxu0 0.0
    %120 = vmatprep.subr.mxu0 0.0
    %121 = vmatpush1.msra.mxu0 0.0
    %122 = vmatprep.subr.mxu0 0.0
    %123 = vmatpush1.msra.mxu0 0.0
    %124 = vmatprep.subr.mxu0 0.0
    %125 = vmatpush1.msra.mxu0 0.0
    %126 = vmatprep.subr.mxu0 0.0
    %127 = vmatpush1.msra.mxu0 0.0
    %128 = vmatprep.subr.mxu0 0.0
    %129 = vmatpush1.msra.mxu0 0.0
    %130 = vmatprep.subr.mxu0 0.0
    %131 = vmatpush1.msra.mxu0 0.0
    %132 = vmatprep.subr.mxu0 0.0
    %133 = vmatpush1.msra.mxu0 0.0
    %134 = vmatprep.subr.mxu0 0.0
    %135 = vmatpush1.msra.mxu0 0.0
    %136 = vmatprep.mubr.f32.mxu0 0.0
    %137 = vmatmul.mubr.f32.gmra.mrb[0].mxu0 %v63
    %v138 = vpop.f32.mrb[0].mxu0
    %v139 = vadd.f32 %v59, %v138
    %v140 = vpop.f32.mrb[0].mxu0
    %141 = vmatprep.mubr.f32.mxu0 0.0
    %142 = vmatmul.mubr.f32.gmra.mrb[0].mxu0 %v66
    %v143 = vpop.f32.mrb[0].mxu0
    %v144 = vadd.f32 %v59, %v143
    %v145 = vpop.f32.mrb[0].mxu0
    %146 = vdwg.mxu0
    %vm147 = vcmask 261120
    %v149 = vsel %vm147, 0.0, 0
    %151 = vmatprep.subr.mxu0 0.0
    %152 = vmatpush1.msra.mxu0 %v50
    %153 = vmatprep.subr.mxu0 0.0
    %154 = vmatpush1.msra.mxu0 %v51
    %155 = vmatprep.subr.mxu0 0.0
    %156 = vmatpush1.msra.mxu0 %v52
    %157 = vmatprep.subr.mxu0 0.0
    %158 = vmatpush1.msra.mxu0 %v53
    %159 = vmatprep.subr.mxu0 0.0
    %160 = vmatpush1.msra.mxu0 0.0
    %161 = vmatprep.subr.mxu0 0.0
    %162 = vmatpush1.msra.mxu0 0.0
    %163 = vmatprep.subr.mxu0 0.0
    %164 = vmatpush1.msra.mxu0 0.0
    %165 = vmatprep.subr.mxu0 0.0
    %166 = vmatpush1.msra.mxu0 0.0
    %167 = vmatprep.subr.mxu0 0.0
    %168 = vmatpush1.msra.mxu0 0.0
    %169 = vmatprep.subr.mxu0 0.0
    %170 = vmatpush1.msra.mxu0 0.0
    %171 = vmatprep.subr.mxu0 0.0
    %172 = vmatpush1.msra.mxu0 0.0
    %173 = vmatprep.subr.mxu0 0.0
    %174 = vmatpush1.msra.mxu0 0.0
    %175 = vmatprep.subr.mxu0 0.0
    %176 = vmatpush1.msra.mxu0 0.0
    %177 = vmatprep.subr.mxu0 0.0
    %178 = vmatpush1.msra.mxu0 0.0
    %179 = vmatprep.subr.mxu0 0.0
    %180 = vmatpush1.msra.mxu0 0.0
    %181 = vmatprep.subr.mxu0 0.0
    %182 = vmatpush1.msra.mxu0 0.0
    %183 = vmatprep.subr.mxu0 0.0
    %184 = vmatpush1.msra.mxu0 0.0
    %185 = vmatprep.subr.mxu0 0.0
    %186 = vmatpush1.msra.mxu0 0.0
    %187 = vmatprep.subr.mxu0 0.0
    %188 = vmatpush1.msra.mxu0 0.0
    %189 = vmatprep.subr.mxu0 0.0
    %190 = vmatpush1.msra.mxu0 0.0
    %191 = vmatprep.subr.mxu0 0.0
    %192 = vmatpush1.msra.mxu0 0.0
    %193 = vmatprep.subr.mxu0 0.0
    %194 = vmatpush1.msra.mxu0 0.0
    %195 = vmatprep.subr.mxu0 0.0
    %196 = vmatpush1.msra.mxu0 0.0
    %197 = vmatprep.subr.mxu0 0.0
    %198 = vmatpush1.msra.mxu0 0.0
    %199 = vmatprep.subr.mxu0 0.0
    %200 = vmatpush1.msra.mxu0 0.0
    %201 = vmatprep.subr.mxu0 0.0
    %202 = vmatpush1.msra.mxu0 0.0
    %203 = vmatprep.subr.mxu0 0.0
    %204 = vmatpush1.msra.mxu0 0.0
    %205 = vmatprep.subr.mxu0 0.0
    %206 = vmatpush1.msra.mxu0 0.0
    %207 = vmatprep.subr.mxu0 0.0
    %208 = vmatpush1.msra.mxu0 0.0
    %209 = vmatprep.subr.mxu0 0.0
    %210 = vmatpush1.msra.mxu0 0.0
    %211 = vmatprep.subr.mxu0 0.0
    %212 = vmatpush1.msra.mxu0 0.0
    %213 = vmatprep.subr.mxu0 0.0
    %214 = vmatpush1.msra.mxu0 0.0
    %215 = vmatprep.mubr.f32.mxu0 0.0
    %216 = vmatmul.mubr.f32.gmra.mrb[0].mxu0 %v149
    %v217 = vpop.f32.mrb[0].mxu0
    %v218 = vadd.f32 0.0, %v217
    %v219 = vpop.f32.mrb[0].mxu0
    %220 = vdwg.mxu0
    %v221 = vadd.f32 %v139, %v218
    %v222 = vmax.f32 %v221, 0.0
    %v224 = vsel %vm147, %v222, 0
    %226 = vmatprep.subr.mxu0 0.0
    %227 = vmatpush1.msra.mxu0 %v50
    %228 = vmatprep.subr.mxu0 0.0
    %229 = vmatpush1.msra.mxu0 %v51
    %230 = vmatprep.subr.mxu0 0.0
    %231 = vmatpush1.msra.mxu0 %v52
    %232 = vmatprep.subr.mxu0 0.0
    %233 = vmatpush1.msra.mxu0 %v53
    %234 = vmatprep.subr.mxu0 0.0
    %235 = vmatpush1.msra.mxu0 0.0
    %236 = vmatprep.subr.mxu0 0.0
    %237 = vmatpush1.msra.mxu0 0.0
    %238 = vmatprep.subr.mxu0 0.0
    %239 = vmatpush1.msra.mxu0 0.0
    %240 = vmatprep.subr.mxu0 0.0
    %241 = vmatpush1.msra.mxu0 0.0
    %242 = vmatprep.subr.mxu0 0.0
    %243 = vmatpush1.msra.mxu0 0.0
    %244 = vmatprep.subr.mxu0 0.0
    %245 = vmatpush1.msra.mxu0 0.0
    %246 = vmatprep.subr.mxu0 0.0
    %247 = vmatpush1.msra.mxu0 0.0
    %248 = vmatprep.subr.mxu0 0.0
    %249 = vmatpush1.msra.mxu0 0.0
    %250 = vmatprep.subr.mxu0 0.0
    %251 = vmatpush1.msra.mxu0 0.0
    %252 = vmatprep.subr.mxu0 0.0
    %253 = vmatpush1.msra.mxu0 0.0
    %254 = vmatprep.subr.mxu0 0.0
    %255 = vmatpush1.msra.mxu0 0.0
    %256 = vmatprep.subr.mxu0 0.0
    %257 = vmatpush1.msra.mxu0 0.0
    %258 = vmatprep.subr.mxu0 0.0
    %259 = vmatpush1.msra.mxu0 0.0
    %260 = vmatprep.subr.mxu0 0.0
    %261 = vmatpush1.msra.mxu0 0.0
    %262 = vmatprep.subr.mxu0 0.0
    %263 = vmatpush1.msra.mxu0 0.0
    %264 = vmatprep.subr.mxu0 0.0
    %265 = vmatpush1.msra.mxu0 0.0
    %266 = vmatprep.subr.mxu0 0.0
    %267 = vmatpush1.msra.mxu0 0.0
    %268 = vmatprep.subr.mxu0 0.0
    %269 = vmatpush1.msra.mxu0 0.0
    %270 = vmatprep.subr.mxu0 0.0
    %271 = vmatpush1.msra.mxu0 0.0
    %272 = vmatprep.subr.mxu0 0.0
    %273 = vmatpush1.msra.mxu0 0.0
    %274 = vmatprep.subr.mxu0 0.0
    %275 = vmatpush1.msra.mxu0 0.0
    %276 = vmatprep.subr.mxu0 0.0
    %277 = vmatpush1.msra.mxu0 0.0
    %278 = vmatprep.subr.mxu0 0.0
    %279 = vmatpush1.msra.mxu0 0.0
    %280 = vmatprep.subr.mxu0 0.0
    %281 = vmatpush1.msra.mxu0 0.0
    %282 = vmatprep.subr.mxu0 0.0
    %283 = vmatpush1.msra.mxu0 0.0
    %284 = vmatprep.subr.mxu0 0.0
    %285 = vmatpush1.msra.mxu0 0.0
    %286 = vmatprep.subr.mxu0 0.0
    %287 = vmatpush1.msra.mxu0 0.0
    %288 = vmatprep.subr.mxu0 0.0
    %289 = vmatpush1.msra.mxu0 0.0
    %290 = vmatprep.mubr.f32.mxu0 0.0
    %291 = vmatmul.mubr.f32.gmra.mrb[0].mxu0 %v224
    %v292 = vpop.f32.mrb[0].mxu0
    %v293 = vadd.f32 0.0, %v292
    %v294 = vpop.f32.mrb[0].mxu0
    %295 = vdwg.mxu0
    %v297 = vrot.slane %v293, 6
    %v299 = vadd.f32 %v139, %v297
    %v300 = vmax.f32 %v299, 0.0
    %v302 = vrot.slane %v300, 2
    %v303 = vsel %vm147, %v302, 0
    %305 = vmatprep.subr.mxu0 0.0
    %306 = vmatpush1.msra.mxu0 %v50
    %307 = vmatprep.subr.mxu0 0.0
    %308 = vmatpush1.msra.mxu0 %v51
    %309 = vmatprep.subr.mxu0 0.0
    %310 = vmatpush1.msra.mxu0 %v52
    %311 = vmatprep.subr.mxu0 0.0
    %312 = vmatpush1.msra.mxu0 %v53
    %313 = vmatprep.subr.mxu0 0.0
    %314 = vmatpush1.msra.mxu0 0.0
    %315 = vmatprep.subr.mxu0 0.0
    %316 = vmatpush1.msra.mxu0 0.0
    %317 = vmatprep.subr.mxu0 0.0
    %318 = vmatpush1.msra.mxu0 0.0
    %319 = vmatprep.subr.mxu0 0.0
    %320 = vmatpush1.msra.mxu0 0.0
    %321 = vmatprep.subr.mxu0 0.0
    %322 = vmatpush1.msra.mxu0 0.0
    %323 = vmatprep.subr.mxu0 0.0
    %324 = vmatpush1.msra.mxu0 0.0
    %325 = vmatprep.subr.mxu0 0.0
    %326 = vmatpush1.msra.mxu0 0.0
    %327 = vmatprep.subr.mxu0 0.0
    %328 = vmatpush1.msra.mxu0 0.0
    %329 = vmatprep.subr.mxu0 0.0
    %330 = vmatpush1.msra.mxu0 0.0
    %331 = vmatprep.subr.mxu0 0.0
    %332 = vmatpush1.msra.mxu0 0.0
    %333 = vmatprep.subr.mxu0 0.0
    %334 = vmatpush1.msra.mxu0 0.0
    %335 = vmatprep.subr.mxu0 0.0
    %336 = vmatpush1.msra.mxu0 0.0
    %337 = vmatprep.subr.mxu0 0.0
    %338 = vmatpush1.msra.mxu0 0.0
    %339 = vmatprep.subr.mxu0 0.0
    %340 = vmatpush1.msra.mxu0 0.0
    %341 = vmatprep.subr.mxu0 0.0
    %342 = vmatpush1.msra.mxu0 0.0
    %343 = vmatprep.subr.mxu0 0.0
    %344 = vmatpush1.msra.mxu0 0.0
    %345 = vmatprep.subr.mxu0 0.0
    %346 = vmatpush1.msra.mxu0 0.0
    %347 = vmatprep.subr.mxu0 0.0
    %348 = vmatpush1.msra.mxu0 0.0
    %349 = vmatprep.subr.mxu0 0.0
    %350 = vmatpush1.msra.mxu0 0.0
    %351 = vmatprep.subr.mxu0 0.0
    %352 = vmatpush1.msra.mxu0 0.0
    %353 = vmatprep.subr.mxu0 0.0
    %354 = vmatpush1.msra.mxu0 0.0
    %355 = vmatprep.subr.mxu0 0.0
    %356 = vmatpush1.msra.mxu0 0.0
    %357 = vmatprep.subr.mxu0 0.0
    %358 = vmatpush1.msra.mxu0 0.0
    %359 = vmatprep.subr.mxu0 0.0
    %360 = vmatpush1.msra.mxu0 0.0
    %361 = vmatprep.subr.mxu0 0.0
    %362 = vmatpush1.msra.mxu0 0.0
    %363 = vmatprep.subr.mxu0 0.0
    %364 = vmatpush1.msra.mxu0 0.0
    %365 = vmatprep.subr.mxu0 0.0
    %366 = vmatpush1.msra.mxu0 0.0
    %367 = vmatprep.subr.mxu0 0.0
    %368 = vmatpush1.msra.mxu0 0.0
    %369 = vmatprep.mubr.f32.mxu0 0.0
    %370 = vmatmul.mubr.f32.gmra.mrb[0].mxu0 %v303
    %v371 = vpop.f32.mrb[0].mxu0
    %v372 = vadd.f32 0.0, %v371
    %v373 = vpop.f32.mrb[0].mxu0
    %374 = vdwg.mxu0
    %v376 = vrot.slane %v372, 4
    %v378 = vadd.f32 %v139, %v376
    %v379 = vmax.f32 %v378, 0.0
    %v381 = vrot.slane %v379, 4
    %v382 = vsel %vm147, %v381, 0
    %384 = vmatprep.subr.mxu0 0.0
    %385 = vmatpush1.msra.mxu0 %v50
    %386 = vmatprep.subr.mxu0 0.0
    %387 = vmatpush1.msra.mxu0 %v51
    %388 = vmatprep.subr.mxu0 0.0
    %389 = vmatpush1.msra.mxu0 %v52
    %390 = vmatprep.subr.mxu0 0.0
    %391 = vmatpush1.msra.mxu0 %v53
    %392 = vmatprep.subr.mxu0 0.0
    %393 = vmatpush1.msra.mxu0 0.0
    %394 = vmatprep.subr.mxu0 0.0
    %395 = vmatpush1.msra.mxu0 0.0
    %396 = vmatprep.subr.mxu0 0.0
    %397 = vmatpush1.msra.mxu0 0.0
    %398 = vmatprep.subr.mxu0 0.0
    %399 = vmatpush1.msra.mxu0 0.0
    %400 = vmatprep.subr.mxu0 0.0
    %401 = vmatpush1.msra.mxu0 0.0
    %402 = vmatprep.subr.mxu0 0.0
    %403 = vmatpush1.msra.mxu0 0.0
    %404 = vmatprep.subr.mxu0 0.0
    %405 = vmatpush1.msra.mxu0 0.0
    %406 = vmatprep.subr.mxu0 0.0
    %407 = vmatpush1.msra.mxu0 0.0
    %408 = vmatprep.subr.mxu0 0.0
    %409 = vmatpush1.msra.mxu0 0.0
    %410 = vmatprep.subr.mxu0 0.0
    %411 = vmatpush1.msra.mxu0 0.0
    %412 = vmatprep.subr.mxu0 0.0
    %413 = vmatpush1.msra.mxu0 0.0
    %414 = vmatprep.subr.mxu0 0.0
    %415 = vmatpush1.msra.mxu0 0.0
    %416 = vmatprep.subr.mxu0 0.0
    %417 = vmatpush1.msra.mxu0 0.0
    %418 = vmatprep.subr.mxu0 0.0
    %419 = vmatpush1.msra.mxu0 0.0
    %420 = vmatprep.subr.mxu0 0.0
    %421 = vmatpush1.msra.mxu0 0.0
    %422 = vmatprep.subr.mxu0 0.0
    %423 = vmatpush1.msra.mxu0 0.0
    %424 = vmatprep.subr.mxu0 0.0
    %425 = vmatpush1.msra.mxu0 0.0
    %426 = vmatprep.subr.mxu0 0.0
    %427 = vmatpush1.msra.mxu0 0.0
    %428 = vmatprep.subr.mxu0 0.0
    %429 = vmatpush1.msra.mxu0 0.0
    %430 = vmatprep.subr.mxu0 0.0
    %431 = vmatpush1.msra.mxu0 0.0
    %432 = vmatprep.subr.mxu0 0.0
    %433 = vmatpush1.msra.mxu0 0.0
    %434 = vmatprep.subr.mxu0 0.0
    %435 = vmatpush1.msra.mxu0 0.0
    %436 = vmatprep.subr.mxu0 0.0
    %437 = vmatpush1.msra.mxu0 0.0
    %438 = vmatprep.subr.mxu0 0.0
    %439 = vmatpush1.msra.mxu0 0.0
    %440 = vmatprep.subr.mxu0 0.0
    %441 = vmatpush1.msra.mxu0 0.0
    %442 = vmatprep.subr.mxu0 0.0
    %443 = vmatpush1.msra.mxu0 0.0
    %444 = vmatprep.subr.mxu0 0.0
    %445 = vmatpush1.msra.mxu0 0.0
    %446 = vmatprep.subr.mxu0 0.0
    %447 = vmatpush1.msra.mxu0 0.0
    %448 = vmatprep.mubr.f32.mxu0 0.0
    %449 = vmatmul.mubr.f32.gmra.mrb[0].mxu0 %v382
    %v450 = vpop.f32.mrb[0].mxu0
    %v451 = vadd.f32 0.0, %v450
    %v452 = vpop.f32.mrb[0].mxu0
    %453 = vdwg.mxu0
    %v455 = vrot.slane %v451, 2
    %v457 = vadd.f32 %v139, %v455
    %v458 = vmax.f32 %v457, 0.0
    %v460 = vrot.slane %v458, 6
    %v461 = vsel %vm147, %v460, 0
    %463 = vmatprep.subr.mxu0 0.0
    %464 = vmatpush1.msra.mxu0 %v50
    %465 = vmatprep.subr.mxu0 0.0
    %466 = vmatpush1.msra.mxu0 %v51
    %467 = vmatprep.subr.mxu0 0.0
    %468 = vmatpush1.msra.mxu0 %v52
    %469 = vmatprep.subr.mxu0 0.0
    %470 = vmatpush1.msra.mxu0 %v53
    %471 = vmatprep.subr.mxu0 0.0
    %472 = vmatpush1.msra.mxu0 0.0
    %473 = vmatprep.subr.mxu0 0.0
    %474 = vmatpush1.msra.mxu0 0.0
    %475 = vmatprep.subr.mxu0 0.0
    %476 = vmatpush1.msra.mxu0 0.0
    %477 = vmatprep.subr.mxu0 0.0
    %478 = vmatpush1.msra.mxu0 0.0
    %479 = vmatprep.subr.mxu0 0.0
    %480 = vmatpush1.msra.mxu0 0.0
    %481 = vmatprep.subr.mxu0 0.0
    %482 = vmatpush1.msra.mxu0 0.0
    %483 = vmatprep.subr.mxu0 0.0
    %484 = vmatpush1.msra.mxu0 0.0
    %485 = vmatprep.subr.mxu0 0.0
    %486 = vmatpush1.msra.mxu0 0.0
    %487 = vmatprep.subr.mxu0 0.0
    %488 = vmatpush1.msra.mxu0 0.0
    %489 = vmatprep.subr.mxu0 0.0
    %490 = vmatpush1.msra.mxu0 0.0
    %491 = vmatprep.subr.mxu0 0.0
    %492 = vmatpush1.msra.mxu0 0.0
    %493 = vmatprep.subr.mxu0 0.0
    %494 = vmatpush1.msra.mxu0 0.0
    %495 = vmatprep.subr.mxu0 0.0
    %496 = vmatpush1.msra.mxu0 0.0
    %497 = vmatprep.subr.mxu0 0.0
    %498 = vmatpush1.msra.mxu0 0.0
    %499 = vmatprep.subr.mxu0 0.0
    %500 = vmatpush1.msra.mxu0 0.0
    %501 = vmatprep.subr.mxu0 0.0
    %502 = vmatpush1.msra.mxu0 0.0
    %503 = vmatprep.subr.mxu0 0.0
    %504 = vmatpush1.msra.mxu0 0.0
    %505 = vmatprep.subr.mxu0 0.0
    %506 = vmatpush1.msra.mxu0 0.0
    %507 = vmatprep.subr.mxu0 0.0
    %508 = vmatpush1.msra.mxu0 0.0
    %509 = vmatprep.subr.mxu0 0.0
    %510 = vmatpush1.msra.mxu0 0.0
    %511 = vmatprep.subr.mxu0 0.0
    %512 = vmatpush1.msra.mxu0 0.0
    %513 = vmatprep.subr.mxu0 0.0
    %514 = vmatpush1.msra.mxu0 0.0
    %515 = vmatprep.subr.mxu0 0.0
    %516 = vmatpush1.msra.mxu0 0.0
    %517 = vmatprep.subr.mxu0 0.0
    %518 = vmatpush1.msra.mxu0 0.0
    %519 = vmatprep.subr.mxu0 0.0
    %520 = vmatpush1.msra.mxu0 0.0
    %521 = vmatprep.subr.mxu0 0.0
    %522 = vmatpush1.msra.mxu0 0.0
    %523 = vmatprep.subr.mxu0 0.0
    %524 = vmatpush1.msra.mxu0 0.0
    %525 = vmatprep.subr.mxu0 0.0
    %526 = vmatpush1.msra.mxu0 0.0
    %527 = vmatprep.mubr.f32.mxu0 0.0
    %528 = vmatmul.mubr.f32.gmra.mrb[0].mxu0 %v461
    %v529 = vpop.f32.mrb[0].mxu0
    %v530 = vadd.f32 0.0, %v529
    %v531 = vpop.f32.mrb[0].mxu0
    %532 = vdwg.mxu0
    %v533 = vadd.f32 %v144, %v530
    %v534 = vmax.f32 %v533, 0.0
    %v536 = vsel %vm147, %v534, 0
    %538 = vmatprep.subr.mxu0 0.0
    %539 = vmatpush1.msra.mxu0 %v50
    %540 = vmatprep.subr.mxu0 0.0
    %541 = vmatpush1.msra.mxu0 %v51
    %542 = vmatprep.subr.mxu0 0.0
    %543 = vmatpush1.msra.mxu0 %v52
    %544 = vmatprep.subr.mxu0 0.0
    %545 = vmatpush1.msra.mxu0 %v53
    %546 = vmatprep.subr.mxu0 0.0
    %547 = vmatpush1.msra.mxu0 0.0
    %548 = vmatprep.subr.mxu0 0.0
    %549 = vmatpush1.msra.mxu0 0.0
    %550 = vmatprep.subr.mxu0 0.0
    %551 = vmatpush1.msra.mxu0 0.0
    %552 = vmatprep.subr.mxu0 0.0
    %553 = vmatpush1.msra.mxu0 0.0
    %554 = vmatprep.subr.mxu0 0.0
    %555 = vmatpush1.msra.mxu0 0.0
    %556 = vmatprep.subr.mxu0 0.0
    %557 = vmatpush1.msra.mxu0 0.0
    %558 = vmatprep.subr.mxu0 0.0
    %559 = vmatpush1.msra.mxu0 0.0
    %560 = vmatprep.subr.mxu0 0.0
    %561 = vmatpush1.msra.mxu0 0.0
    %562 = vmatprep.subr.mxu0 0.0
    %563 = vmatpush1.msra.mxu0 0.0
    %564 = vmatprep.subr.mxu0 0.0
    %565 = vmatpush1.msra.mxu0 0.0
    %566 = vmatprep.subr.mxu0 0.0
    %567 = vmatpush1.msra.mxu0 0.0
    %568 = vmatprep.subr.mxu0 0.0
    %569 = vmatpush1.msra.mxu0 0.0
    %570 = vmatprep.subr.mxu0 0.0
    %571 = vmatpush1.msra.mxu0 0.0
    %572 = vmatprep.subr.mxu0 0.0
    %573 = vmatpush1.msra.mxu0 0.0
    %574 = vmatprep.subr.mxu0 0.0
    %575 = vmatpush1.msra.mxu0 0.0
    %576 = vmatprep.subr.mxu0 0.0
    %577 = vmatpush1.msra.mxu0 0.0
    %578 = vmatprep.subr.mxu0 0.0
    %579 = vmatpush1.msra.mxu0 0.0
    %580 = vmatprep.subr.mxu0 0.0
    %581 = vmatpush1.msra.mxu0 0.0
    %582 = vmatprep.subr.mxu0 0.0
    %583 = vmatpush1.msra.mxu0 0.0
    %584 = vmatprep.subr.mxu0 0.0
    %585 = vmatpush1.msra.mxu0 0.0
    %586 = vmatprep.subr.mxu0 0.0
    %587 = vmatpush1.msra.mxu0 0.0
    %588 = vmatprep.subr.mxu0 0.0
    %589 = vmatpush1.msra.mxu0 0.0
    %590 = vmatprep.subr.mxu0 0.0
    %591 = vmatpush1.msra.mxu0 0.0
    %592 = vmatprep.subr.mxu0 0.0
    %593 = vmatpush1.msra.mxu0 0.0
    %594 = vmatprep.subr.mxu0 0.0
    %595 = vmatpush1.msra.mxu0 0.0
    %596 = vmatprep.subr.mxu0 0.0
    %597 = vmatpush1.msra.mxu0 0.0
    %598 = vmatprep.subr.mxu0 0.0
    %599 = vmatpush1.msra.mxu0 0.0
    %600 = vmatprep.subr.mxu0 0.0
    %601 = vmatpush1.msra.mxu0 0.0
    %602 = vmatprep.mubr.f32.mxu0 0.0
    %603 = vmatmul.mubr.f32.gmra.mrb[0].mxu0 %v536
    %v604 = vpop.f32.mrb[0].mxu0
    %v605 = vadd.f32 0.0, %v604
    %v606 = vpop.f32.mrb[0].mxu0
    %607 = vdwg.mxu0
    %v609 = vrot.slane %v605, 6
    %v611 = vadd.f32 %v144, %v609
    %v612 = vmax.f32 %v611, 0.0
    %v614 = vrot.slane %v612, 2
    %v615 = vsel %vm147, %v614, 0
    %617 = vmatprep.subr.mxu0 0.0
    %618 = vmatpush1.msra.mxu0 %v50
    %619 = vmatprep.subr.mxu0 0.0
    %620 = vmatpush1.msra.mxu0 %v51
    %621 = vmatprep.subr.mxu0 0.0
    %622 = vmatpush1.msra.mxu0 %v52
    %623 = vmatprep.subr.mxu0 0.0
    %624 = vmatpush1.msra.mxu0 %v53
    %625 = vmatprep.subr.mxu0 0.0
    %626 = vmatpush1.msra.mxu0 0.0
    %627 = vmatprep.subr.mxu0 0.0
    %628 = vmatpush1.msra.mxu0 0.0
    %629 = vmatprep.subr.mxu0 0.0
    %630 = vmatpush1.msra.mxu0 0.0
    %631 = vmatprep.subr.mxu0 0.0
    %632 = vmatpush1.msra.mxu0 0.0
    %633 = vmatprep.subr.mxu0 0.0
    %634 = vmatpush1.msra.mxu0 0.0
    %635 = vmatprep.subr.mxu0 0.0
    %636 = vmatpush1.msra.mxu0 0.0
    %637 = vmatprep.subr.mxu0 0.0
    %638 = vmatpush1.msra.mxu0 0.0
    %639 = vmatprep.subr.mxu0 0.0
    %640 = vmatpush1.msra.mxu0 0.0
    %641 = vmatprep.subr.mxu0 0.0
    %642 = vmatpush1.msra.mxu0 0.0
    %643 = vmatprep.subr.mxu0 0.0
    %644 = vmatpush1.msra.mxu0 0.0
    %645 = vmatprep.subr.mxu0 0.0
    %646 = vmatpush1.msra.mxu0 0.0
    %647 = vmatprep.subr.mxu0 0.0
    %648 = vmatpush1.msra.mxu0 0.0
    %649 = vmatprep.subr.mxu0 0.0
    %650 = vmatpush1.msra.mxu0 0.0
    %651 = vmatprep.subr.mxu0 0.0
    %652 = vmatpush1.msra.mxu0 0.0
    %653 = vmatprep.subr.mxu0 0.0
    %654 = vmatpush1.msra.mxu0 0.0
    %655 = vmatprep.subr.mxu0 0.0
    %656 = vmatpush1.msra.mxu0 0.0
    %657 = vmatprep.subr.mxu0 0.0
    %658 = vmatpush1.msra.mxu0 0.0
    %659 = vmatprep.subr.mxu0 0.0
    %660 = vmatpush1.msra.mxu0 0.0
    %661 = vmatprep.subr.mxu0 0.0
    %662 = vmatpush1.msra.mxu0 0.0
    %663 = vmatprep.subr.mxu0 0.0
    %664 = vmatpush1.msra.mxu0 0.0
    %665 = vmatprep.subr.mxu0 0.0
    %666 = vmatpush1.msra.mxu0 0.0
    %667 = vmatprep.subr.mxu0 0.0
    %668 = vmatpush1.msra.mxu0 0.0
    %669 = vmatprep.subr.mxu0 0.0
    %670 = vmatpush1.msra.mxu0 0.0
    %671 = vmatprep.subr.mxu0 0.0
    %672 = vmatpush1.msra.mxu0 0.0
    %673 = vmatprep.subr.mxu0 0.0
    %674 = vmatpush1.msra.mxu0 0.0
    %675 = vmatprep.subr.mxu0 0.0
    %676 = vmatpush1.msra.mxu0 0.0
    %677 = vmatprep.subr.mxu0 0.0
    %678 = vmatpush1.msra.mxu0 0.0
    %679 = vmatprep.subr.mxu0 0.0
    %680 = vmatpush1.msra.mxu0 0.0
    %681 = vmatprep.mubr.f32.mxu0 0.0
    %682 = vmatmul.mubr.f32.gmra.mrb[0].mxu0 %v615
    %v683 = vpop.f32.mrb[0].mxu0
    %v684 = vadd.f32 0.0, %v683
    %v685 = vpop.f32.mrb[0].mxu0
    %686 = vdwg.mxu0
    %v688 = vrot.slane %v684, 4
    %v690 = vadd.f32 %v144, %v688
    %v691 = vmax.f32 %v690, 0.0
    %v693 = vrot.slane %v691, 4
    %v694 = vsel %vm147, %v693, 0
    %696 = vmatprep.subr.mxu0 0.0
    %697 = vmatpush1.msra.mxu0 %v50
    %698 = vmatprep.subr.mxu0 0.0
    %699 = vmatpush1.msra.mxu0 %v51
    %700 = vmatprep.subr.mxu0 0.0
    %701 = vmatpush1.msra.mxu0 %v52
    %702 = vmatprep.subr.mxu0 0.0
    %703 = vmatpush1.msra.mxu0 %v53
    %704 = vmatprep.subr.mxu0 0.0
    %705 = vmatpush1.msra.mxu0 0.0
    %706 = vmatprep.subr.mxu0 0.0
    %707 = vmatpush1.msra.mxu0 0.0
    %708 = vmatprep.subr.mxu0 0.0
    %709 = vmatpush1.msra.mxu0 0.0
    %710 = vmatprep.subr.mxu0 0.0
    %711 = vmatpush1.msra.mxu0 0.0
    %712 = vmatprep.subr.mxu0 0.0
    %713 = vmatpush1.msra.mxu0 0.0
    %714 = vmatprep.subr.mxu0 0.0
    %715 = vmatpush1.msra.mxu0 0.0
    %716 = vmatprep.subr.mxu0 0.0
    %717 = vmatpush1.msra.mxu0 0.0
    %718 = vmatprep.subr.mxu0 0.0
    %719 = vmatpush1.msra.mxu0 0.0
    %720 = vmatprep.subr.mxu0 0.0
    %721 = vmatpush1.msra.mxu0 0.0
    %722 = vmatprep.subr.mxu0 0.0
    %723 = vmatpush1.msra.mxu0 0.0
    %724 = vmatprep.subr.mxu0 0.0
    %725 = vmatpush1.msra.mxu0 0.0
    %726 = vmatprep.subr.mxu0 0.0
    %727 = vmatpush1.msra.mxu0 0.0
    %728 = vmatprep.subr.mxu0 0.0
    %729 = vmatpush1.msra.mxu0 0.0
    %730 = vmatprep.subr.mxu0 0.0
    %731 = vmatpush1.msra.mxu0 0.0
    %732 = vmatprep.subr.mxu0 0.0
    %733 = vmatpush1.msra.mxu0 0.0
    %734 = vmatprep.subr.mxu0 0.0
    %735 = vmatpush1.msra.mxu0 0.0
    %736 = vmatprep.subr.mxu0 0.0
    %737 = vmatpush1.msra.mxu0 0.0
    %738 = vmatprep.subr.mxu0 0.0
    %739 = vmatpush1.msra.mxu0 0.0
    %740 = vmatprep.subr.mxu0 0.0
    %741 = vmatpush1.msra.mxu0 0.0
    %742 = vmatprep.subr.mxu0 0.0
    %743 = vmatpush1.msra.mxu0 0.0
    %744 = vmatprep.subr.mxu0 0.0
    %745 = vmatpush1.msra.mxu0 0.0
    %746 = vmatprep.subr.mxu0 0.0
    %747 = vmatpush1.msra.mxu0 0.0
    %748 = vmatprep.subr.mxu0 0.0
    %749 = vmatpush1.msra.mxu0 0.0
    %750 = vmatprep.subr.mxu0 0.0
    %751 = vmatpush1.msra.mxu0 0.0
    %752 = vmatprep.subr.mxu0 0.0
    %753 = vmatpush1.msra.mxu0 0.0
    %754 = vmatprep.subr.mxu0 0.0
    %755 = vmatpush1.msra.mxu0 0.0
    %756 = vmatprep.subr.mxu0 0.0
    %757 = vmatpush1.msra.mxu0 0.0
    %758 = vmatprep.subr.mxu0 0.0
    %759 = vmatpush1.msra.mxu0 0.0
    %760 = vmatprep.mubr.f32.mxu0 0.0
    %761 = vmatmul.mubr.f32.gmra.mrb[0].mxu0 %v694
    %v762 = vpop.f32.mrb[0].mxu0
    %v763 = vadd.f32 0.0, %v762
    %v764 = vpop.f32.mrb[0].mxu0
    %765 = vdwg.mxu0
    %v767 = vrot.slane %v763, 2
    %v769 = vadd.f32 %v144, %v767
    %v770 = vmax.f32 %v769, 0.0
    %vm771 = vcmask 1041408
    %v772 = vsel %vm771, %v222, %v300
    %v773 = vsel %vm68, %v772, %v379
    %vm774 = vcmask 1045504
    %v775 = vsel %vm774, %v773, %v458
    %v776 = vsel %vm771, %v534, %v612
    %v777 = vsel %vm68, %v776, %v691
    %v778 = vsel %vm774, %v777, %v770
    %v779 = vld [vmem:[%s4] sm:$0xff]
    %v780 = vld [vmem:[%s4 + $0x8] sm:$0xff]
    %v781 = vld [vmem:[%s4 + $0x10] sm:$0xff]
    %v782 = vld [vmem:[%s4 + $0x18] sm:$0xff]
    %v783 = vld [vmem:[#allocation2] sm:$0xff]
    %v784 = vld [vmem:[#allocation2 + $0x8] sm:$0xff]
    %v785 = vld [vmem:[#allocation2 + $0x10] sm:$0xff]
    %v786 = vld [vmem:[#allocation2 + $0x18] sm:$0xff]
    %v787 = vld [vmem:[%s6] sm:$0x1]
    %v789 = vlaneseq
    %v790 = vshrl.u32 %v789, 7
    %v791 = vsub.s32 0, %v790
    %v792 = vrot.slane %v787, %v791
    %v795 = vsel %vm147, %v775, 0
    %v798 = vsel %vm147, %v778, 0
    %800 = vmatprep.subr.mxu0 0.0
    %801 = vmatpush1.msra.mxu0 %v779
    %802 = vmatprep.subr.mxu0 0.0
    %803 = vmatpush1.msra.mxu0 %v780
    %804 = vmatprep.subr.mxu0 0.0
    %805 = vmatpush1.msra.mxu0 %v781
    %806 = vmatprep.subr.mxu0 0.0
    %807 = vmatpush1.msra.mxu0 %v782
    %808 = vmatprep.subr.mxu0 0.0
    %809 = vmatpush1.msra.mxu0 0.0
    %810 = vmatprep.subr.mxu0 0.0
    %811 = vmatpush1.msra.mxu0 0.0
    %812 = vmatprep.subr.mxu0 0.0
    %813 = vmatpush1.msra.mxu0 0.0
    %814 = vmatprep.subr.mxu0 0.0
    %815 = vmatpush1.msra.mxu0 0.0
    %816 = vmatprep.subr.mxu0 0.0
    %817 = vmatpush1.msra.mxu0 0.0
    %818 = vmatprep.subr.mxu0 0.0
    %819 = vmatpush1.msra.mxu0 0.0
    %820 = vmatprep.subr.mxu0 0.0
    %821 = vmatpush1.msra.mxu0 0.0
    %822 = vmatprep.subr.mxu0 0.0
    %823 = vmatpush1.msra.mxu0 0.0
    %824 = vmatprep.subr.mxu0 0.0
    %825 = vmatpush1.msra.mxu0 0.0
    %826 = vmatprep.subr.mxu0 0.0
    %827 = vmatpush1.msra.mxu0 0.0
    %828 = vmatprep.subr.mxu0 0.0
    %829 = vmatpush1.msra.mxu0 0.0
    %830 = vmatprep.subr.mxu0 0.0
    %831 = vmatpush1.msra.mxu0 0.0
    %832 = vmatprep.subr.mxu0 0.0
    %833 = vmatpush1.msra.mxu0 0.0
    %834 = vmatprep.subr.mxu0 0.0
    %835 = vmatpush1.msra.mxu0 0.0
    %836 = vmatprep.subr.mxu0 0.0
    %837 = vmatpush1.msra.mxu0 0.0
    %838 = vmatprep.subr.mxu0 0.0
    %839 = vmatpush1.msra.mxu0 0.0
    %840 = vmatprep.subr.mxu0 0.0
    %841 = vmatpush1.msra.mxu0 0.0
    %842 = vmatprep.subr.mxu0 0.0
    %843 = vmatpush1.msra.mxu0 0.0
    %844 = vmatprep.subr.mxu0 0.0
    %845 = vmatpush1.msra.mxu0 0.0
    %846 = vmatprep.subr.mxu0 0.0
    %847 = vmatpush1.msra.mxu0 0.0
    %848 = vmatprep.subr.mxu0 0.0
    %849 = vmatpush1.msra.mxu0 0.0
    %850 = vmatprep.subr.mxu0 0.0
    %851 = vmatpush1.msra.mxu0 0.0
    %852 = vmatprep.subr.mxu0 0.0
    %853 = vmatpush1.msra.mxu0 0.0
    %854 = vmatprep.subr.mxu0 0.0
    %855 = vmatpush1.msra.mxu0 0.0
    %856 = vmatprep.subr.mxu0 0.0
    %857 = vmatpush1.msra.mxu0 0.0
    %858 = vmatprep.subr.mxu0 0.0
    %859 = vmatpush1.msra.mxu0 0.0
    %860 = vmatprep.subr.mxu0 0.0
    %861 = vmatpush1.msra.mxu0 0.0
    %862 = vmatprep.subr.mxu0 0.0
    %863 = vmatpush1.msra.mxu0 0.0
    %864 = vmatprep.mubr.f32.mxu0 0.0
    %865 = vmatmul.mubr.f32.gmra.mrb[0].mxu0 %v795
    %v866 = vpop.f32.mrb[0].mxu0
    %v867 = vadd.f32 %v792, %v866
    %v868 = vpop.f32.mrb[0].mxu0
    %869 = vmatprep.mubr.f32.mxu0 0.0
    %870 = vmatmul.mubr.f32.gmra.mrb[0].mxu0 %v798
    %v871 = vpop.f32.mrb[0].mxu0
    %v872 = vadd.f32 %v792, %v871
    %v873 = vpop.f32.mrb[0].mxu0
    %874 = vdwg.mxu0
    %875 = vmatprep.subr.mxu0 0.0
    %876 = vmatpush1.msra.mxu0 %v783
    %877 = vmatprep.subr.mxu0 0.0
    %878 = vmatpush1.msra.mxu0 %v784
    %879 = vmatprep.subr.mxu0 0.0
    %880 = vmatpush1.msra.mxu0 %v785
    %881 = vmatprep.subr.mxu0 0.0
    %882 = vmatpush1.msra.mxu0 %v786
    %883 = vmatprep.subr.mxu0 0.0
    %884 = vmatpush1.msra.mxu0 0.0
    %885 = vmatprep.subr.mxu0 0.0
    %886 = vmatpush1.msra.mxu0 0.0
    %887 = vmatprep.subr.mxu0 0.0
    %888 = vmatpush1.msra.mxu0 0.0
    %889 = vmatprep.subr.mxu0 0.0
    %890 = vmatpush1.msra.mxu0 0.0
    %891 = vmatprep.subr.mxu0 0.0
    %892 = vmatpush1.msra.mxu0 0.0
    %893 = vmatprep.subr.mxu0 0.0
    %894 = vmatpush1.msra.mxu0 0.0
    %895 = vmatprep.subr.mxu0 0.0
    %896 = vmatpush1.msra.mxu0 0.0
    %897 = vmatprep.subr.mxu0 0.0
    %898 = vmatpush1.msra.mxu0 0.0
    %899 = vmatprep.subr.mxu0 0.0
    %900 = vmatpush1.msra.mxu0 0.0
    %901 = vmatprep.subr.mxu0 0.0
    %902 = vmatpush1.msra.mxu0 0.0
    %903 = vmatprep.subr.mxu0 0.0
    %904 = vmatpush1.msra.mxu0 0.0
    %905 = vmatprep.subr.mxu0 0.0
    %906 = vmatpush1.msra.mxu0 0.0
    %907 = vmatprep.subr.mxu0 0.0
    %908 = vmatpush1.msra.mxu0 0.0
    %909 = vmatprep.subr.mxu0 0.0
    %910 = vmatpush1.msra.mxu0 0.0
    %911 = vmatprep.subr.mxu0 0.0
    %912 = vmatpush1.msra.mxu0 0.0
    %913 = vmatprep.subr.mxu0 0.0
    %914 = vmatpush1.msra.mxu0 0.0
    %915 = vmatprep.subr.mxu0 0.0
    %916 = vmatpush1.msra.mxu0 0.0
    %917 = vmatprep.subr.mxu0 0.0
    %918 = vmatpush1.msra.mxu0 0.0
    %919 = vmatprep.subr.mxu0 0.0
    %920 = vmatpush1.msra.mxu0 0.0
    %921 = vmatprep.subr.mxu0 0.0
    %922 = vmatpush1.msra.mxu0 0.0
    %923 = vmatprep.subr.mxu0 0.0
    %924 = vmatpush1.msra.mxu0 0.0
    %925 = vmatprep.subr.mxu0 0.0
    %926 = vmatpush1.msra.mxu0 0.0
    %927 = vmatprep.subr.mxu0 0.0
    %928 = vmatpush1.msra.mxu0 0.0
    %929 = vmatprep.subr.mxu0 0.0
    %930 = vmatpush1.msra.mxu0 0.0
    %931 = vmatprep.subr.mxu0 0.0
    %932 = vmatpush1.msra.mxu0 0.0
    %933 = vmatprep.subr.mxu0 0.0
    %934 = vmatpush1.msra.mxu0 0.0
    %935 = vmatprep.subr.mxu0 0.0
    %936 = vmatpush1.msra.mxu0 0.0
    %937 = vmatprep.subr.mxu0 0.0
    %938 = vmatpush1.msra.mxu0 0.0
    %939 = vmatprep.mubr.f32.mxu0 0.0
    %940 = vmatmul.mubr.f32.gmra.mrb[0].mxu0 %v149
    %v941 = vpop.f32.mrb[0].mxu0
    %v942 = vadd.f32 0.0, %v941
    %v943 = vpop.f32.mrb[0].mxu0
    %944 = vdwg.mxu0
    %v945 = vadd.f32 %v867, %v942
    %v946 = vmax.f32 %v945, 0.0
    %v948 = vsel %vm147, %v946, 0
    %950 = vmatprep.subr.mxu0 0.0
    %951 = vmatpush1.msra.mxu0 %v783
    %952 = vmatprep.subr.mxu0 0.0
    %953 = vmatpush1.msra.mxu0 %v784
    %954 = vmatprep.subr.mxu0 0.0
    %955 = vmatpush1.msra.mxu0 %v785
    %956 = vmatprep.subr.mxu0 0.0
    %957 = vmatpush1.msra.mxu0 %v786
    %958 = vmatprep.subr.mxu0 0.0
    %959 = vmatpush1.msra.mxu0 0.0
    %960 = vmatprep.subr.mxu0 0.0
    %961 = vmatpush1.msra.mxu0 0.0
    %962 = vmatprep.subr.mxu0 0.0
    %963 = vmatpush1.msra.mxu0 0.0
    %964 = vmatprep.subr.mxu0 0.0
    %965 = vmatpush1.msra.mxu0 0.0
    %966 = vmatprep.subr.mxu0 0.0
    %967 = vmatpush1.msra.mxu0 0.0
    %968 = vmatprep.subr.mxu0 0.0
    %969 = vmatpush1.msra.mxu0 0.0
    %970 = vmatprep.subr.mxu0 0.0
    %971 = vmatpush1.msra.mxu0 0.0
    %972 = vmatprep.subr.mxu0 0.0
    %973 = vmatpush1.msra.mxu0 0.0
    %974 = vmatprep.subr.mxu0 0.0
    %975 = vmatpush1.msra.mxu0 0.0
    %976 = vmatprep.subr.mxu0 0.0
    %977 = vmatpush1.msra.mxu0 0.0
    %978 = vmatprep.subr.mxu0 0.0
    %979 = vmatpush1.msra.mxu0 0.0
    %980 = vmatprep.subr.mxu0 0.0
    %981 = vmatpush1.msra.mxu0 0.0
    %982 = vmatprep.subr.mxu0 0.0
    %983 = vmatpush1.msra.mxu0 0.0
    %984 = vmatprep.subr.mxu0 0.0
    %985 = vmatpush1.msra.mxu0 0.0
    %986 = vmatprep.subr.mxu0 0.0
    %987 = vmatpush1.msra.mxu0 0.0
    %988 = vmatprep.subr.mxu0 0.0
    %989 = vmatpush1.msra.mxu0 0.0
    %990 = vmatprep.subr.mxu0 0.0
    %991 = vmatpush1.msra.mxu0 0.0
    %992 = vmatprep.subr.mxu0 0.0
    %993 = vmatpush1.msra.mxu0 0.0
    %994 = vmatprep.subr.mxu0 0.0
    %995 = vmatpush1.msra.mxu0 0.0
    %996 = vmatprep.subr.mxu0 0.0
    %997 = vmatpush1.msra.mxu0 0.0
    %998 = vmatprep.subr.mxu0 0.0
    %999 = vmatpush1.msra.mxu0 0.0
    %1000 = vmatprep.subr.mxu0 0.0
    %1001 = vmatpush1.msra.mxu0 0.0
    %1002 = vmatprep.subr.mxu0 0.0
    %1003 = vmatpush1.msra.mxu0 0.0
    %1004 = vmatprep.subr.mxu0 0.0
    %1005 = vmatpush1.msra.mxu0 0.0
    %1006 = vmatprep.subr.mxu0 0.0
    %1007 = vmatpush1.msra.mxu0 0.0
    %1008 = vmatprep.subr.mxu0 0.0
    %1009 = vmatpush1.msra.mxu0 0.0
    %1010 = vmatprep.subr.mxu0 0.0
    %1011 = vmatpush1.msra.mxu0 0.0
    %1012 = vmatprep.subr.mxu0 0.0
    %1013 = vmatpush1.msra.mxu0 0.0
    %1014 = vmatprep.mubr.f32.mxu0 0.0
    %1015 = vmatmul.mubr.f32.gmra.mrb[0].mxu0 %v948
    %v1016 = vpop.f32.mrb[0].mxu0
    %v1017 = vadd.f32 0.0, %v1016
    %v1018 = vpop.f32.mrb[0].mxu0
    %1019 = vdwg.mxu0
    %v1021 = vrot.slane %v1017, 6
    %v1023 = vadd.f32 %v867, %v1021
    %v1024 = vmax.f32 %v1023, 0.0
    %v1026 = vrot.slane %v1024, 2
    %v1027 = vsel %vm147, %v1026, 0
    %1029 = vmatprep.subr.mxu0 0.0
    %1030 = vmatpush1.msra.mxu0 %v783
    %1031 = vmatprep.subr.mxu0 0.0
    %1032 = vmatpush1.msra.mxu0 %v784
    %1033 = vmatprep.subr.mxu0 0.0
    %1034 = vmatpush1.msra.mxu0 %v785
    %1035 = vmatprep.subr.mxu0 0.0
    %1036 = vmatpush1.msra.mxu0 %v786
    %1037 = vmatprep.subr.mxu0 0.0
    %1038 = vmatpush1.msra.mxu0 0.0
    %1039 = vmatprep.subr.mxu0 0.0
    %1040 = vmatpush1.msra.mxu0 0.0
    %1041 = vmatprep.subr.mxu0 0.0
    %1042 = vmatpush1.msra.mxu0 0.0
    %1043 = vmatprep.subr.mxu0 0.0
    %1044 = vmatpush1.msra.mxu0 0.0
    %1045 = vmatprep.subr.mxu0 0.0
    %1046 = vmatpush1.msra.mxu0 0.0
    %1047 = vmatprep.subr.mxu0 0.0
    %1048 = vmatpush1.msra.mxu0 0.0
    %1049 = vmatprep.subr.mxu0 0.0
    %1050 = vmatpush1.msra.mxu0 0.0
    %1051 = vmatprep.subr.mxu0 0.0
    %1052 = vmatpush1.msra.mxu0 0.0
    %1053 = vmatprep.subr.mxu0 0.0
    %1054 = vmatpush1.msra.mxu0 0.0
    %1055 = vmatprep.subr.mxu0 0.0
    %1056 = vmatpush1.msra.mxu0 0.0
    %1057 = vmatprep.subr.mxu0 0.0
    %1058 = vmatpush1.msra.mxu0 0.0
    %1059 = vmatprep.subr.mxu0 0.0
    %1060 = vmatpush1.msra.mxu0 0.0
    %1061 = vmatprep.subr.mxu0 0.0
    %1062 = vmatpush1.msra.mxu0 0.0
    %1063 = vmatprep.subr.mxu0 0.0
    %1064 = vmatpush1.msra.mxu0 0.0
    %1065 = vmatprep.subr.mxu0 0.0
    %1066 = vmatpush1.msra.mxu0 0.0
    %1067 = vmatprep.subr.mxu0 0.0
    %1068 = vmatpush1.msra.mxu0 0.0
    %1069 = vmatprep.subr.mxu0 0.0
    %1070 = vmatpush1.msra.mxu0 0.0
    %1071 = vmatprep.subr.mxu0 0.0
    %1072 = vmatpush1.msra.mxu0 0.0
    %1073 = vmatprep.subr.mxu0 0.0
    %1074 = vmatpush1.msra.mxu0 0.0
    %1075 = vmatprep.subr.mxu0 0.0
    %1076 = vmatpush1.msra.mxu0 0.0
    %1077 = vmatprep.subr.mxu0 0.0
    %1078 = vmatpush1.msra.mxu0 0.0
    %1079 = vmatprep.subr.mxu0 0.0
    %1080 = vmatpush1.msra.mxu0 0.0
    %1081 = vmatprep.subr.mxu0 0.0
    %1082 = vmatpush1.msra.mxu0 0.0
    %1083 = vmatprep.subr.mxu0 0.0
    %1084 = vmatpush1.msra.mxu0 0.0
    %1085 = vmatprep.subr.mxu0 0.0
    %1086 = vmatpush1.msra.mxu0 0.0
    %1087 = vmatprep.subr.mxu0 0.0
    %1088 = vmatpush1.msra.mxu0 0.0
    %1089 = vmatprep.subr.mxu0 0.0
    %1090 = vmatpush1.msra.mxu0 0.0
    %1091 = vmatprep.subr.mxu0 0.0
    %1092 = vmatpush1.msra.mxu0 0.0
    %1093 = vmatprep.mubr.f32.mxu0 0.0
    %1094 = vmatmul.mubr.f32.gmra.mrb[0].mxu0 %v1027
    %v1095 = vpop.f32.mrb[0].mxu0
    %v1096 = vadd.f32 0.0, %v1095
    %v1097 = vpop.f32.mrb[0].mxu0
    %1098 = vdwg.mxu0
    %v1100 = vrot.slane %v1096, 4
    %v1102 = vadd.f32 %v867, %v1100
    %v1103 = vmax.f32 %v1102, 0.0
    %v1105 = vrot.slane %v1103, 4
    %v1106 = vsel %vm147, %v1105, 0
    %1108 = vmatprep.subr.mxu0 0.0
    %1109 = vmatpush1.msra.mxu0 %v783
    %1110 = vmatprep.subr.mxu0 0.0
    %1111 = vmatpush1.msra.mxu0 %v784
    %1112 = vmatprep.subr.mxu0 0.0
    %1113 = vmatpush1.msra.mxu0 %v785
    %1114 = vmatprep.subr.mxu0 0.0
    %1115 = vmatpush1.msra.mxu0 %v786
    %1116 = vmatprep.subr.mxu0 0.0
    %1117 = vmatpush1.msra.mxu0 0.0
    %1118 = vmatprep.subr.mxu0 0.0
    %1119 = vmatpush1.msra.mxu0 0.0
    %1120 = vmatprep.subr.mxu0 0.0
    %1121 = vmatpush1.msra.mxu0 0.0
    %1122 = vmatprep.subr.mxu0 0.0
    %1123 = vmatpush1.msra.mxu0 0.0
    %1124 = vmatprep.subr.mxu0 0.0
    %1125 = vmatpush1.msra.mxu0 0.0
    %1126 = vmatprep.subr.mxu0 0.0
    %1127 = vmatpush1.msra.mxu0 0.0
    %1128 = vmatprep.subr.mxu0 0.0
    %1129 = vmatpush1.msra.mxu0 0.0
    %1130 = vmatprep.subr.mxu0 0.0
    %1131 = vmatpush1.msra.mxu0 0.0
    %1132 = vmatprep.subr.mxu0 0.0
    %1133 = vmatpush1.msra.mxu0 0.0
    %1134 = vmatprep.subr.mxu0 0.0
    %1135 = vmatpush1.msra.mxu0 0.0
    %1136 = vmatprep.subr.mxu0 0.0
    %1137 = vmatpush1.msra.mxu0 0.0
    %1138 = vmatprep.subr.mxu0 0.0
    %1139 = vmatpush1.msra.mxu0 0.0
    %1140 = vmatprep.subr.mxu0 0.0
    %1141 = vmatpush1.msra.mxu0 0.0
    %1142 = vmatprep.subr.mxu0 0.0
    %1143 = vmatpush1.msra.mxu0 0.0
    %1144 = vmatprep.subr.mxu0 0.0
    %1145 = vmatpush1.msra.mxu0 0.0
    %1146 = vmatprep.subr.mxu0 0.0
    %1147 = vmatpush1.msra.mxu0 0.0
    %1148 = vmatprep.subr.mxu0 0.0
    %1149 = vmatpush1.msra.mxu0 0.0
    %1150 = vmatprep.subr.mxu0 0.0
    %1151 = vmatpush1.msra.mxu0 0.0
    %1152 = vmatprep.subr.mxu0 0.0
    %1153 = vmatpush1.msra.mxu0 0.0
    %1154 = vmatprep.subr.mxu0 0.0
    %1155 = vmatpush1.msra.mxu0 0.0
    %1156 = vmatprep.subr.mxu0 0.0
    %1157 = vmatpush1.msra.mxu0 0.0
    %1158 = vmatprep.subr.mxu0 0.0
    %1159 = vmatpush1.msra.mxu0 0.0
    %1160 = vmatprep.subr.mxu0 0.0
    %1161 = vmatpush1.msra.mxu0 0.0
    %1162 = vmatprep.subr.mxu0 0.0
    %1163 = vmatpush1.msra.mxu0 0.0
    %1164 = vmatprep.subr.mxu0 0.0
    %1165 = vmatpush1.msra.mxu0 0.0
    %1166 = vmatprep.subr.mxu0 0.0
    %1167 = vmatpush1.msra.mxu0 0.0
    %1168 = vmatprep.subr.mxu0 0.0
    %1169 = vmatpush1.msra.mxu0 0.0
    %1170 = vmatprep.subr.mxu0 0.0
    %1171 = vmatpush1.msra.mxu0 0.0
    %1172 = vmatprep.mubr.f32.mxu0 0.0
    %1173 = vmatmul.mubr.f32.gmra.mrb[0].mxu0 %v1106
    %v1174 = vpop.f32.mrb[0].mxu0
    %v1175 = vadd.f32 0.0, %v1174
    %v1176 = vpop.f32.mrb[0].mxu0
    %1177 = vdwg.mxu0
    %v1179 = vrot.slane %v1175, 2
    %v1181 = vadd.f32 %v867, %v1179
    %v1182 = vmax.f32 %v1181, 0.0
    %v1184 = vrot.slane %v1182, 6
    %v1185 = vsel %vm147, %v1184, 0
    %1187 = vmatprep.subr.mxu0 0.0
    %1188 = vmatpush1.msra.mxu0 %v783
    %1189 = vmatprep.subr.mxu0 0.0
    %1190 = vmatpush1.msra.mxu0 %v784
    %1191 = vmatprep.subr.mxu0 0.0
    %1192 = vmatpush1.msra.mxu0 %v785
    %1193 = vmatprep.subr.mxu0 0.0
    %1194 = vmatpush1.msra.mxu0 %v786
    %1195 = vmatprep.subr.mxu0 0.0
    %1196 = vmatpush1.msra.mxu0 0.0
    %1197 = vmatprep.subr.mxu0 0.0
    %1198 = vmatpush1.msra.mxu0 0.0
    %1199 = vmatprep.subr.mxu0 0.0
    %1200 = vmatpush1.msra.mxu0 0.0
    %1201 = vmatprep.subr.mxu0 0.0
    %1202 = vmatpush1.msra.mxu0 0.0
    %1203 = vmatprep.subr.mxu0 0.0
    %1204 = vmatpush1.msra.mxu0 0.0
    %1205 = vmatprep.subr.mxu0 0.0
    %1206 = vmatpush1.msra.mxu0 0.0
    %1207 = vmatprep.subr.mxu0 0.0
    %1208 = vmatpush1.msra.mxu0 0.0
    %1209 = vmatprep.subr.mxu0 0.0
    %1210 = vmatpush1.msra.mxu0 0.0
    %1211 = vmatprep.subr.mxu0 0.0
    %1212 = vmatpush1.msra.mxu0 0.0
    %1213 = vmatprep.subr.mxu0 0.0
    %1214 = vmatpush1.msra.mxu0 0.0
    %1215 = vmatprep.subr.mxu0 0.0
    %1216 = vmatpush1.msra.mxu0 0.0
    %1217 = vmatprep.subr.mxu0 0.0
    %1218 = vmatpush1.msra.mxu0 0.0
    %1219 = vmatprep.subr.mxu0 0.0
    %1220 = vmatpush1.msra.mxu0 0.0
    %1221 = vmatprep.subr.mxu0 0.0
    %1222 = vmatpush1.msra.mxu0 0.0
    %1223 = vmatprep.subr.mxu0 0.0
    %1224 = vmatpush1.msra.mxu0 0.0
    %1225 = vmatprep.subr.mxu0 0.0
    %1226 = vmatpush1.msra.mxu0 0.0
    %1227 = vmatprep.subr.mxu0 0.0
    %1228 = vmatpush1.msra.mxu0 0.0
    %1229 = vmatprep.subr.mxu0 0.0
    %1230 = vmatpush1.msra.mxu0 0.0
    %1231 = vmatprep.subr.mxu0 0.0
    %1232 = vmatpush1.msra.mxu0 0.0
    %1233 = vmatprep.subr.mxu0 0.0
    %1234 = vmatpush1.msra.mxu0 0.0
    %1235 = vmatprep.subr.mxu0 0.0
    %1236 = vmatpush1.msra.mxu0 0.0
    %1237 = vmatprep.subr.mxu0 0.0
    %1238 = vmatpush1.msra.mxu0 0.0
    %1239 = vmatprep.subr.mxu0 0.0
    %1240 = vmatpush1.msra.mxu0 0.0
    %1241 = vmatprep.subr.mxu0 0.0
    %1242 = vmatpush1.msra.mxu0 0.0
    %1243 = vmatprep.subr.mxu0 0.0
    %1244 = vmatpush1.msra.mxu0 0.0
    %1245 = vmatprep.subr.mxu0 0.0
    %1246 = vmatpush1.msra.mxu0 0.0
    %1247 = vmatprep.subr.mxu0 0.0
    %1248 = vmatpush1.msra.mxu0 0.0
    %1249 = vmatprep.subr.mxu0 0.0
    %1250 = vmatpush1.msra.mxu0 0.0
    %1251 = vmatprep.mubr.f32.mxu0 0.0
    %1252 = vmatmul.mubr.f32.gmra.mrb[0].mxu0 %v1185
    %v1253 = vpop.f32.mrb[0].mxu0
    %v1254 = vadd.f32 0.0, %v1253
    %v1255 = vpop.f32.mrb[0].mxu0
    %1256 = vdwg.mxu0
    %v1257 = vadd.f32 %v872, %v1254
    %v1258 = vmax.f32 %v1257, 0.0
    %v1260 = vsel %vm147, %v1258, 0
    %1262 = vmatprep.subr.mxu0 0.0
    %1263 = vmatpush1.msra.mxu0 %v783
    %1264 = vmatprep.subr.mxu0 0.0
    %1265 = vmatpush1.msra.mxu0 %v784
    %1266 = vmatprep.subr.mxu0 0.0
    %1267 = vmatpush1.msra.mxu0 %v785
    %1268 = vmatprep.subr.mxu0 0.0
    %1269 = vmatpush1.msra.mxu0 %v786
    %1270 = vmatprep.subr.mxu0 0.0
    %1271 = vmatpush1.msra.mxu0 0.0
    %1272 = vmatprep.subr.mxu0 0.0
    %1273 = vmatpush1.msra.mxu0 0.0
    %1274 = vmatprep.subr.mxu0 0.0
    %1275 = vmatpush1.msra.mxu0 0.0
    %1276 = vmatprep.subr.mxu0 0.0
    %1277 = vmatpush1.msra.mxu0 0.0
    %1278 = vmatprep.subr.mxu0 0.0
    %1279 = vmatpush1.msra.mxu0 0.0
    %1280 = vmatprep.subr.mxu0 0.0
    %1281 = vmatpush1.msra.mxu0 0.0
    %1282 = vmatprep.subr.mxu0 0.0
    %1283 = vmatpush1.msra.mxu0 0.0
    %1284 = vmatprep.subr.mxu0 0.0
    %1285 = vmatpush1.msra.mxu0 0.0
    %1286 = vmatprep.subr.mxu0 0.0
    %1287 = vmatpush1.msra.mxu0 0.0
    %1288 = vmatprep.subr.mxu0 0.0
    %1289 = vmatpush1.msra.mxu0 0.0
    %1290 = vmatprep.subr.mxu0 0.0
    %1291 = vmatpush1.msra.mxu0 0.0
    %1292 = vmatprep.subr.mxu0 0.0
    %1293 = vmatpush1.msra.mxu0 0.0
    %1294 = vmatprep.subr.mxu0 0.0
    %1295 = vmatpush1.msra.mxu0 0.0
    %1296 = vmatprep.subr.mxu0 0.0
    %1297 = vmatpush1.msra.mxu0 0.0
    %1298 = vmatprep.subr.mxu0 0.0
    %1299 = vmatpush1.msra.mxu0 0.0
    %1300 = vmatprep.subr.mxu0 0.0
    %1301 = vmatpush1.msra.mxu0 0.0
    %1302 = vmatprep.subr.mxu0 0.0
    %1303 = vmatpush1.msra.mxu0 0.0
    %1304 = vmatprep.subr.mxu0 0.0
    %1305 = vmatpush1.msra.mxu0 0.0
    %1306 = vmatprep.subr.mxu0 0.0
    %1307 = vmatpush1.msra.mxu0 0.0
    %1308 = vmatprep.subr.mxu0 0.0
    %1309 = vmatpush1.msra.mxu0 0.0
    %1310 = vmatprep.subr.mxu0 0.0
    %1311 = vmatpush1.msra.mxu0 0.0
    %1312 = vmatprep.subr.mxu0 0.0
    %1313 = vmatpush1.msra.mxu0 0.0
    %1314 = vmatprep.subr.mxu0 0.0
    %1315 = vmatpush1.msra.mxu0 0.0
    %1316 = vmatprep.subr.mxu0 0.0
    %1317 = vmatpush1.msra.mxu0 0.0
    %1318 = vmatprep.subr.mxu0 0.0
    %1319 = vmatpush1.msra.mxu0 0.0
    %1320 = vmatprep.subr.mxu0 0.0
    %1321 = vmatpush1.msra.mxu0 0.0
    %1322 = vmatprep.subr.mxu0 0.0
    %1323 = vmatpush1.msra.mxu0 0.0
    %1324 = vmatprep.subr.mxu0 0.0
    %1325 = vmatpush1.msra.mxu0 0.0
    %1326 = vmatprep.mubr.f32.mxu0 0.0
    %1327 = vmatmul.mubr.f32.gmra.mrb[0].mxu0 %v1260
    %v1328 = vpop.f32.mrb[0].mxu0
    %v1329 = vadd.f32 0.0, %v1328
    %v1330 = vpop.f32.mrb[0].mxu0
    %1331 = vdwg.mxu0
    %v1333 = vrot.slane %v1329, 6
    %v1335 = vadd.f32 %v872, %v1333
    %v1336 = vmax.f32 %v1335, 0.0
    %v1338 = vrot.slane %v1336, 2
    %v1339 = vsel %vm147, %v1338, 0
    %1341 = vmatprep.subr.mxu0 0.0
    %1342 = vmatpush1.msra.mxu0 %v783
    %1343 = vmatprep.subr.mxu0 0.0
    %1344 = vmatpush1.msra.mxu0 %v784
    %1345 = vmatprep.subr.mxu0 0.0
    %1346 = vmatpush1.msra.mxu0 %v785
    %1347 = vmatprep.subr.mxu0 0.0
    %1348 = vmatpush1.msra.mxu0 %v786
    %1349 = vmatprep.subr.mxu0 0.0
    %1350 = vmatpush1.msra.mxu0 0.0
    %1351 = vmatprep.subr.mxu0 0.0
    %1352 = vmatpush1.msra.mxu0 0.0
    %1353 = vmatprep.subr.mxu0 0.0
    %1354 = vmatpush1.msra.mxu0 0.0
    %1355 = vmatprep.subr.mxu0 0.0
    %1356 = vmatpush1.msra.mxu0 0.0
    %1357 = vmatprep.subr.mxu0 0.0
    %1358 = vmatpush1.msra.mxu0 0.0
    %1359 = vmatprep.subr.mxu0 0.0
    %1360 = vmatpush1.msra.mxu0 0.0
    %1361 = vmatprep.subr.mxu0 0.0
    %1362 = vmatpush1.msra.mxu0 0.0
    %1363 = vmatprep.subr.mxu0 0.0
    %1364 = vmatpush1.msra.mxu0 0.0
    %1365 = vmatprep.subr.mxu0 0.0
    %1366 = vmatpush1.msra.mxu0 0.0
    %1367 = vmatprep.subr.mxu0 0.0
    %1368 = vmatpush1.msra.mxu0 0.0
    %1369 = vmatprep.subr.mxu0 0.0
    %1370 = vmatpush1.msra.mxu0 0.0
    %1371 = vmatprep.subr.mxu0 0.0
    %1372 = vmatpush1.msra.mxu0 0.0
    %1373 = vmatprep.subr.mxu0 0.0
    %1374 = vmatpush1.msra.mxu0 0.0
    %1375 = vmatprep.subr.mxu0 0.0
    %1376 = vmatpush1.msra.mxu0 0.0
    %1377 = vmatprep.subr.mxu0 0.0
    %1378 = vmatpush1.msra.mxu0 0.0
    %1379 = vmatprep.subr.mxu0 0.0
    %1380 = vmatpush1.msra.mxu0 0.0
    %1381 = vmatprep.subr.mxu0 0.0
    %1382 = vmatpush1.msra.mxu0 0.0
    %1383 = vmatprep.subr.mxu0 0.0
    %1384 = vmatpush1.msra.mxu0 0.0
    %1385 = vmatprep.subr.mxu0 0.0
    %1386 = vmatpush1.msra.mxu0 0.0
    %1387 = vmatprep.subr.mxu0 0.0
    %1388 = vmatpush1.msra.mxu0 0.0
    %1389 = vmatprep.subr.mxu0 0.0
    %1390 = vmatpush1.msra.mxu0 0.0
    %1391 = vmatprep.subr.mxu0 0.0
    %1392 = vmatpush1.msra.mxu0 0.0
    %1393 = vmatprep.subr.mxu0 0.0
    %1394 = vmatpush1.msra.mxu0 0.0
    %1395 = vmatprep.subr.mxu0 0.0
    %1396 = vmatpush1.msra.mxu0 0.0
    %1397 = vmatprep.subr.mxu0 0.0
    %1398 = vmatpush1.msra.mxu0 0.0
    %1399 = vmatprep.subr.mxu0 0.0
    %1400 = vmatpush1.msra.mxu0 0.0
    %1401 = vmatprep.subr.mxu0 0.0
    %1402 = vmatpush1.msra.mxu0 0.0
    %1403 = vmatprep.subr.mxu0 0.0
    %1404 = vmatpush1.msra.mxu0 0.0
    %1405 = vmatprep.mubr.f32.mxu0 0.0
    %1406 = vmatmul.mubr.f32.gmra.mrb[0].mxu0 %v1339
    %v1407 = vpop.f32.mrb[0].mxu0
    %v1408 = vadd.f32 0.0, %v1407
    %v1409 = vpop.f32.mrb[0].mxu0
    %1410 = vdwg.mxu0
    %v1412 = vrot.slane %v1408, 4
    %v1414 = vadd.f32 %v872, %v1412
    %v1415 = vmax.f32 %v1414, 0.0
    %v1417 = vrot.slane %v1415, 4
    %v1418 = vsel %vm147, %v1417, 0
    %1420 = vmatprep.subr.mxu0 0.0
    %1421 = vmatpush1.msra.mxu0 %v783
    %1422 = vmatprep.subr.mxu0 0.0
    %1423 = vmatpush1.msra.mxu0 %v784
    %1424 = vmatprep.subr.mxu0 0.0
    %1425 = vmatpush1.msra.mxu0 %v785
    %1426 = vmatprep.subr.mxu0 0.0
    %1427 = vmatpush1.msra.mxu0 %v786
    %1428 = vmatprep.subr.mxu0 0.0
    %1429 = vmatpush1.msra.mxu0 0.0
    %1430 = vmatprep.subr.mxu0 0.0
    %1431 = vmatpush1.msra.mxu0 0.0
    %1432 = vmatprep.subr.mxu0 0.0
    %1433 = vmatpush1.msra.mxu0 0.0
    %1434 = vmatprep.subr.mxu0 0.0
    %1435 = vmatpush1.msra.mxu0 0.0
    %1436 = vmatprep.subr.mxu0 0.0
    %1437 = vmatpush1.msra.mxu0 0.0
    %1438 = vmatprep.subr.mxu0 0.0
    %1439 = vmatpush1.msra.mxu0 0.0
    %1440 = vmatprep.subr.mxu0 0.0
    %1441 = vmatpush1.msra.mxu0 0.0
    %1442 = vmatprep.subr.mxu0 0.0
    %1443 = vmatpush1.msra.mxu0 0.0
    %1444 = vmatprep.subr.mxu0 0.0
    %1445 = vmatpush1.msra.mxu0 0.0
    %1446 = vmatprep.subr.mxu0 0.0
    %1447 = vmatpush1.msra.mxu0 0.0
    %1448 = vmatprep.subr.mxu0 0.0
    %1449 = vmatpush1.msra.mxu0 0.0
    %1450 = vmatprep.subr.mxu0 0.0
    %1451 = vmatpush1.msra.mxu0 0.0
    %1452 = vmatprep.subr.mxu0 0.0
    %1453 = vmatpush1.msra.mxu0 0.0
    %1454 = vmatprep.subr.mxu0 0.0
    %1455 = vmatpush1.msra.mxu0 0.0
    %1456 = vmatprep.subr.mxu0 0.0
    %1457 = vmatpush1.msra.mxu0 0.0
    %1458 = vmatprep.subr.mxu0 0.0
    %1459 = vmatpush1.msra.mxu0 0.0
    %1460 = vmatprep.subr.mxu0 0.0
    %1461 = vmatpush1.msra.mxu0 0.0
    %1462 = vmatprep.subr.mxu0 0.0
    %1463 = vmatpush1.msra.mxu0 0.0
    %1464 = vmatprep.subr.mxu0 0.0
    %1465 = vmatpush1.msra.mxu0 0.0
    %1466 = vmatprep.subr.mxu0 0.0
    %1467 = vmatpush1.msra.mxu0 0.0
    %1468 = vmatprep.subr.mxu0 0.0
    %1469 = vmatpush1.msra.mxu0 0.0
    %1470 = vmatprep.subr.mxu0 0.0
    %1471 = vmatpush1.msra.mxu0 0.0
    %1472 = vmatprep.subr.mxu0 0.0
    %1473 = vmatpush1.msra.mxu0 0.0
    %1474 = vmatprep.subr.mxu0 0.0
    %1475 = vmatpush1.msra.mxu0 0.0
    %1476 = vmatprep.subr.mxu0 0.0
    %1477 = vmatpush1.msra.mxu0 0.0
    %1478 = vmatprep.subr.mxu0 0.0
    %1479 = vmatpush1.msra.mxu0 0.0
    %1480 = vmatprep.subr.mxu0 0.0
    %1481 = vmatpush1.msra.mxu0 0.0
    %1482 = vmatprep.subr.mxu0 0.0
    %1483 = vmatpush1.msra.mxu0 0.0
    %1484 = vmatprep.mubr.f32.mxu0 0.0
    %1485 = vmatmul.mubr.f32.gmra.mrb[0].mxu0 %v1418
    %v1486 = vpop.f32.mrb[0].mxu0
    %v1487 = vadd.f32 0.0, %v1486
    %v1488 = vpop.f32.mrb[0].mxu0
    %1489 = vdwg.mxu0
    %v1491 = vrot.slane %v1487, 2
    %v1493 = vadd.f32 %v872, %v1491
    %v1494 = vmax.f32 %v1493, 0.0
    %v1495 = vld [vmem:[%s7] sm:$0xff]
    %v1496 = vld [vmem:[%s7 + $0x8] sm:$0xff]
    %v1497 = vld [vmem:[%s7 + $0x10] sm:$0xff]
    %v1498 = vld [vmem:[%s7 + $0x18] sm:$0xff]
    %v1499 = vld [vmem:[%s8] sm:$0x1]
    %v1501 = vlaneseq
    %v1502 = vshrl.u32 %v1501, 7
    %v1503 = vsub.s32 0, %v1502
    %v1504 = vrot.slane %v1499, %v1503
    %v1507 = vrot.slane %v1494, 6
    %v1508 = vsel %vm147, %v1507, 0
    %1510 = vmatprep.subr.mxu0 0.0
    %1511 = vmatpush1.msra.mxu0 %v1495
    %1512 = vmatprep.subr.mxu0 0.0
    %1513 = vmatpush1.msra.mxu0 %v1496
    %1514 = vmatprep.subr.mxu0 0.0
    %1515 = vmatpush1.msra.mxu0 %v1497
    %1516 = vmatprep.subr.mxu0 0.0
    %1517 = vmatpush1.msra.mxu0 %v1498
    %1518 = vmatprep.subr.mxu0 0.0
    %1519 = vmatpush1.msra.mxu0 0.0
    %1520 = vmatprep.subr.mxu0 0.0
    %1521 = vmatpush1.msra.mxu0 0.0
    %1522 = vmatprep.subr.mxu0 0.0
    %1523 = vmatpush1.msra.mxu0 0.0
    %1524 = vmatprep.subr.mxu0 0.0
    %1525 = vmatpush1.msra.mxu0 0.0
    %1526 = vmatprep.subr.mxu0 0.0
    %1527 = vmatpush1.msra.mxu0 0.0
    %1528 = vmatprep.subr.mxu0 0.0
    %1529 = vmatpush1.msra.mxu0 0.0
    %1530 = vmatprep.subr.mxu0 0.0
    %1531 = vmatpush1.msra.mxu0 0.0
    %1532 = vmatprep.subr.mxu0 0.0
    %1533 = vmatpush1.msra.mxu0 0.0
    %1534 = vmatprep.subr.mxu0 0.0
    %1535 = vmatpush1.msra.mxu0 0.0
    %1536 = vmatprep.subr.mxu0 0.0
    %1537 = vmatpush1.msra.mxu0 0.0
    %1538 = vmatprep.subr.mxu0 0.0
    %1539 = vmatpush1.msra.mxu0 0.0
    %1540 = vmatprep.subr.mxu0 0.0
    %1541 = vmatpush1.msra.mxu0 0.0
    %1542 = vmatprep.subr.mxu0 0.0
    %1543 = vmatpush1.msra.mxu0 0.0
    %1544 = vmatprep.subr.mxu0 0.0
    %1545 = vmatpush1.msra.mxu0 0.0
    %1546 = vmatprep.subr.mxu0 0.0
    %1547 = vmatpush1.msra.mxu0 0.0
    %1548 = vmatprep.subr.mxu0 0.0
    %1549 = vmatpush1.msra.mxu0 0.0
    %1550 = vmatprep.subr.mxu0 0.0
    %1551 = vmatpush1.msra.mxu0 0.0
    %1552 = vmatprep.subr.mxu0 0.0
    %1553 = vmatpush1.msra.mxu0 0.0
    %1554 = vmatprep.subr.mxu0 0.0
    %1555 = vmatpush1.msra.mxu0 0.0
    %1556 = vmatprep.subr.mxu0 0.0
    %1557 = vmatpush1.msra.mxu0 0.0
    %1558 = vmatprep.subr.mxu0 0.0
    %1559 = vmatpush1.msra.mxu0 0.0
    %1560 = vmatprep.subr.mxu0 0.0
    %1561 = vmatpush1.msra.mxu0 0.0
    %1562 = vmatprep.subr.mxu0 0.0
    %1563 = vmatpush1.msra.mxu0 0.0
    %1564 = vmatprep.subr.mxu0 0.0
    %1565 = vmatpush1.msra.mxu0 0.0
    %1566 = vmatprep.subr.mxu0 0.0
    %1567 = vmatpush1.msra.mxu0 0.0
    %1568 = vmatprep.subr.mxu0 0.0
    %1569 = vmatpush1.msra.mxu0 0.0
    %1570 = vmatprep.subr.mxu0 0.0
    %1571 = vmatpush1.msra.mxu0 0.0
    %1572 = vmatprep.subr.mxu0 0.0
    %1573 = vmatpush1.msra.mxu0 0.0
    %1574 = vmatprep.mubr.f32.mxu0 0.0
    %1575 = vmatmul.mubr.f32.gmra.mrb[0].mxu0 %v1508
    %v1576 = vpop.f32.mrb[0].mxu0
    %v1577 = vadd.f32 %v1504, %v1576
    %v1578 = vpop.f32.mrb[0].mxu0
    %1579 = vdwg.mxu0
    %vm1580 = vcmask 9216
    %1581 = vst.msk [vmem:[#allocation5] sm:$0x3] %vm1580, %v1577
    // Predicated region
    $region42: #{fused_forward.1} parent=1 // pred_check
      _
    $region43: #{fused_forward.1} parent=1 // pred_check_branch
      %1583 = sbr.rel (0) target = $region45
    $region44: #{fused_forward.1} parent=1 // pred_region
      %s1585 = ssub.s32 32, 32
      %1586 = vsyncadd [#allocation4], %s1585
      %s1588 = sshll.u32 [#allocation5], 4
      %s1589 = int_to_ptr.vmem [resolvable:$true] %s1588
      %1591 = dma.vmem_to_hbm [thread:$0]  %s1589, 32, %s9, [#allocation4]
    $region45: #{fused_forward.1} parent=1 // pred_fallthru
      _
    // Predicated region
    $region46: #{fused_forward.1} parent=1 // pred_check
      _
    $region47: #{fused_forward.1} parent=1 // pred_check_branch
      %1593 = sbr.rel (0) target = $region49
    $region48: #{fused_forward.1} parent=1 // pred_region
      %1594 = dma.done [#allocation4], 32
    $region49: #{fused_forward.1} parent=1 // pred_fallthru
      _
    %1595 = vsyncpa [#allocation3], 1
    %1596 = vsyncpa [#allocation4], 1

</llo_original>
